<compile_context>
chip_gen: v7x
topology: tpu7x:2x2x1
jax: 0.10.0
libtpu: 0.0.40
codegen_flags: <defaults>
</compile_context>

<pallas_src>
import numpy as np
import jax
import jax.numpy as jnp
from jax.experimental import pallas as pl
from jax.experimental.pallas import tpu as pltpu

_LANE = 128

# ----------------------------------------------------------------------------- db6 filters
# Classical Daubechies-12 (db6) scaling coefficients == pywt rec_lo.
_DB6_REC_LO = np.array([
    0.11154074335008017, 0.4946238903983854, 0.7511339080215775,
    0.3152503517092432, -0.22626469396516913, -0.12976686756709563,
    0.09750160558707936, 0.02752286553001629, -0.031582039318031156,
    0.0005538422009938016, 0.004777257511010651, -0.00107730108499558,
], dtype=np.float64)
_L = _DB6_REC_LO.size
# pywt qmf(rec_lo): rec_hi[k] = (-1)**k * rec_lo[L-1-k]
_DB6_REC_HI = ((-1.0) ** np.arange(_L)) * _DB6_REC_LO[::-1]


def _round_up(n, m):
    return ((n + m - 1) // m) * m


def _symmetric_reflect(idx, n):
    """pywt 'symmetric' (half-sample) boundary extension of an index into [0, n)."""
    v = float(idx) + 0.5                       # reflect around -0.5 and n-0.5
    period = 2.0 * n
    m = np.fmod(v, period)
    if m < 0:
        m += period
    out = (period - m if m >= n else m) - 0.5
    return int(round(out))


def _analysis_matrices(n_in):
    """Dense operators for one symmetric db6 DWT level: lo = x@A_lo, hi = x@A_hi."""
    n_out = (n_in + _L - 1) // 2               # pywt.dwt_coeff_len
    p = 2 * (n_out - 1) - n_in + _L
    pad_l = p // 2
    a_lo = np.zeros((n_in, n_out), np.float64)
    a_hi = np.zeros((n_in, n_out), np.float64)
    for n in range(n_out):
        for k in range(_L):
            src = _symmetric_reflect(2 * n + k - pad_l, n_in)
            # conv filters in pytorch_wavelets are dec_* reversed == rec_* (cross-corr taps)
            a_lo[src, n] += _DB6_REC_LO[k]
            a_hi[src, n] += _DB6_REC_HI[k]
    return a_lo, a_hi, n_out


def _synthesis_matrices(n_c, n_lo_in):
    """Operators for one symmetric db6 IDWT level: y = lo@S_lo + hi@S_hi.

    n_c is the detail length; n_lo_in (>= n_c) the incoming approximation length.  Rows
    [n_c, n_lo_in) of S_lo stay zero, implementing the pytorch_wavelets 'trim trailing
    sample of lo' rule with no slicing.
    """
    assert n_lo_in >= n_c
    n_y = 2 * n_c - _L + 2                     # conv_transpose(stride=2, padding=L-2)
    pad = _L - 2
    s_lo = np.zeros((n_lo_in, n_y), np.float64)
    s_hi = np.zeros((n_c, n_y), np.float64)
    for n in range(n_c):
        for k in range(_L):
            m = 2 * n + k - pad
            if 0 <= m < n_y:
                s_lo[n, m] += _DB6_REC_LO[k]
                s_hi[n, m] += _DB6_REC_HI[k]
    return s_lo, s_hi, n_y


# ----------------------------------------------------------------------------- fused kernel
def _make_waveconv_kernel(level, channels, b_tile, lo_pads):
    """Fused kernel. Refs: x, A_0..A_{J-1}, S_0..S_{J-1} (coarsest-first), W, out."""

    def kernel(*refs):
        x_ref = refs[0]
        a_refs = refs[1:1 + level]
        s_refs = refs[1 + level:1 + 2 * level]
        w_ref = refs[1 + 2 * level]
        o_ref = refs[2 + 2 * level]

        c, bt, l0 = x_ref.shape
        # (C, B_tile, L) -> (C*B_tile, L): layout-free collapse (last dim unchanged,
        # B_tile multiple of 8), rows = contiguous per-channel batch blocks.
        cur = x_ref[...].reshape(c * bt, l0)                  # bf16

        # ---- analysis: one merged [A_lo | A_hi] GEMM per level, lane-aligned split ----
        details = []
        for j in range(level):
            a = a_refs[j][...]                                # (K_pad, lo_pad + hi_pad) bf16
            y = jnp.dot(cur.astype(jnp.bfloat16), a,
                        preferred_element_type=jnp.float32)
            details.append(y[:, lo_pads[j]:])                 # hi block (128-aligned slice)
            cur = y[:, :lo_pads[j]]                           # lo block (zero-padded cols)

        # ---- per-mode channel mix: einsum('bix,iox->box') as VPU FMAs over Cin ----
        # Rows of v are contiguous B_tile blocks per input channel; weight rows are read
        # from the ref where used; two independent partial sums expose VALU ILP.
        def channel_mix(v):                                   # (Cin*B_tile, modes_pad) f32
            out_blocks = []
            for o in range(channels):
                acc0 = acc1 = None
                for i in range(channels):
                    w_row = w_ref[i, o:o + 1, :]              # (1, modes_pad) bf16
                    term = v[i * b_tile:(i + 1) * b_tile, :] * w_row
                    if i % 2 == 0:
                        acc0 = term if acc0 is None else acc0 + term
                    else:
                        acc1 = term if acc1 is None else acc1 + term
                out_blocks.append(acc0 if acc1 is None else acc0 + acc1)
            return jnp.concatenate(out_blocks, axis=0)        # (Cout*B_tile, modes_pad)

        cur = channel_mix(cur)                                # mixed approximation
        details[-1] = channel_mix(details[-1])                # mixed coarsest detail

        # ---- synthesis: coarsest -> finest, one stacked [S_lo; S_hi] GEMM per level ----
        y = cur
        for step, j in enumerate(range(level - 1, -1, -1)):
            s = s_refs[step][...]                             # (lo_pad + hi_pad, out_pad)
            cat = jnp.concatenate(
                [y.astype(jnp.bfloat16), details[j].astype(jnp.bfloat16)], axis=-1)
            y = jnp.dot(cat, s, preferred_element_type=jnp.float32)

        out_pad = o_ref.shape[-1]                             # multiple of 128: lane-dense store
        o_ref[...] = y.reshape(o_ref.shape[0], bt, out_pad).astype(o_ref.dtype)

    return kernel


# ----------------------------------------------------------------------------- module port
class WaveConv1d:
    """Pallas port of PyTorch WaveConv1d: db6 DWT -> per-mode channel mix -> IDWT."""

    def __init__(self, in_channels, out_channels, level, signal_length, key):
        # pytorch_wavelets IDWT recombines untouched detail bands (in_channels) with the
        # transformed approximation (out_channels); as in the original usage we require
        # matching channel counts.
        assert in_channels == out_channels, "IDWT recombination needs in_channels == out_channels"
        assert level >= 1
        self.in_channels = in_channels
        self.out_channels = out_channels
        self.level = level
        self.signal_length = signal_length

        # ---- exact (unpadded) per-level operators; f32 copies kept for the JAX reference --
        a_np = []
        self.lengths = [signal_length]
        n = signal_length
        for _ in range(level):
            a_lo, a_hi, n = _analysis_matrices(n)
            a_np.append((a_lo, a_hi))
            self.lengths.append(n)
        self.modes1 = n                          # == DWT1D(dummy)[0].shape[-1] in PyTorch

        s_np = []
        n_lo = self.modes1
        for j in range(level - 1, -1, -1):
            n_c = self.lengths[j + 1]
            s_lo, s_hi, n_lo = _synthesis_matrices(n_c, n_lo)
            s_np.append((s_lo, s_hi))
        self.out_length = n_lo

        self.ref_a = [(jnp.asarray(a, jnp.float32), jnp.asarray(h, jnp.float32))
                      for a, h in a_np]
        self.ref_s = [(jnp.asarray(a, jnp.float32), jnp.asarray(h, jnp.float32))
                      for a, h in s_np]

        # ---- merged, 128-lane-padded operators for the kernel (bf16) ----
        # Analysis level j: [A_lo | A_hi] with the lo block padded to a multiple of 128, so
        # the in-kernel lo/hi split is a lane-aligned slice; the pad columns are zero, and
        # the next level's operator has matching zero rows, so padding never leaks.
        self.a_mats, lo_pads = [], []
        k_carry = signal_length
        for j in range(level):
            a_lo, a_hi = a_np[j]
            n_in, n_out = a_lo.shape
            lo_pad = _round_up(n_out, _LANE)
            hi_pad = _round_up(n_out, _LANE)
            merged = np.zeros((k_carry, lo_pad + hi_pad), np.float64)
            merged[:n_in, :n_out] = a_lo
            merged[:n_in, lo_pad:lo_pad + n_out] = a_hi
            self.a_mats.append(jnp.asarray(merged, jnp.bfloat16))
            lo_pads.append(lo_pad)
            k_carry = lo_pad
        self.lo_pads = tuple(lo_pads)
        self.modes_pad = self.lo_pads[-1]

        # Synthesis step (coarsest first): stacked [S_lo; S_hi] with zero rows for padding
        # and for the pytorch_wavelets 'trim trailing lo sample' rule; output columns padded
        # to a multiple of 128 (lane-dense stores; wrapper crops).
        self.s_mats = []
        lo_carry = self.modes_pad
        for step in range(level):
            s_lo, s_hi = s_np[step]
            n_lo_in, n_y = s_lo.shape
            n_c = s_hi.shape[0]
            hi_pad = _round_up(n_c, _LANE)
            out_pad = _round_up(n_y, _LANE)
            merged = np.zeros((lo_carry + hi_pad, out_pad), np.float64)
            merged[:n_lo_in, :n_y] = s_lo
            merged[lo_carry:lo_carry + n_c, :n_y] = s_hi
            self.s_mats.append(jnp.asarray(merged, jnp.bfloat16))
            lo_carry = out_pad
        self.out_pad = lo_carry

        scale = 1.0 / (in_channels * out_channels)
        self.weights1 = scale * jax.random.uniform(
            key, (in_channels, out_channels, self.modes1), dtype=jnp.float32)
        # zero-padded to modes_pad so the mode axis matches the padded coefficients.
        self._w_kernel = jnp.pad(
            self.weights1, ((0, 0), (0, 0), (0, self.modes_pad - self.modes1))
        ).astype(jnp.bfloat16)

    # ------------------------------------------------------------------ tiling / VMEM sizing
    def _batch_tile(self, batch):
        # Target M = C*B_tile ~ 256 rows: saturates the v6e/v7x 256-row MXU and is a
        # multiple of 128 for v5e; B_tile is a multiple of 8 so per-channel row blocks are
        # sublane-aligned and the (C,B_tile,L)->(C*B_tile,L) collapse is layout-free.
        target_rows = 256
        bt = max(1, -(-target_rows // self.in_channels))
        bt = _round_up(bt, 8)
        return max(8, min(bt, _round_up(batch, 8)))

    def _vmem_limit_bytes(self, bt, single_buffer_resident):
        def nbytes(a):
            return int(np.prod(a.shape)) * a.dtype.itemsize
        resident = sum(nbytes(m) for m in self.a_mats) + sum(nbytes(m) for m in self.s_mats)
        resident += nbytes(self._w_kernel)
        resident *= 1 if single_buffer_resident else 2
        x_slab = 2 * self.in_channels * bt * self.signal_length * 2      # 2x-buffered bf16 in
        o_slab = 2 * self.out_channels * bt * self.out_pad * 4           # 2x-buffered f32 out
        m_rows = self.in_channels * bt
        widths = (sum(m.shape[1] for m in self.a_mats)
                  + sum(m.shape[1] for m in self.s_mats) + 4 * self.modes_pad)
        work = 4 * m_rows * widths                                       # live f32 values
        total = int(1.3 * (resident + x_slab + o_slab + work))
        # Floor at the 32 MiB default, cap at v7x's 64 MiB per-TC VMEM.
        return int(min(max(total, 32 << 20), 64 << 20))

    # ------------------------------------------------------------------ forward
    def _forward(self, x, single_buffer_resident):
        b, c, l = x.shape
        assert c == self.in_channels and l == self.signal_length
        bt = self._batch_tile(b)
        b_pad = _round_up(b, bt)

        # Channel-major (C, B, L) so each grid step's (C, B_tile, L) slab collapses to
        # per-channel contiguous rows; bf16 halves the input DMA.
        xt = jnp.transpose(x, (1, 0, 2)).astype(jnp.bfloat16)
        if b_pad != b:
            xt = jnp.pad(xt, ((0, 0), (0, b_pad - b), (0, 0)))

        resident_kwargs = {}
        if single_buffer_resident:
            # Constant index maps -> resident operands; single-buffer them to halve VMEM.
            resident_kwargs = dict(pipeline_mode=pl.Buffered(1))

        in_specs = [pl.BlockSpec((c, bt, l), lambda bi: (0, bi, 0))]
        operands = [xt]
        for mat in list(self.a_mats) + list(self.s_mats):
            r, cc = mat.shape
            in_specs.append(pl.BlockSpec((r, cc), lambda bi: (0, 0), **resident_kwargs))
            operands.append(mat)
        in_specs.append(pl.BlockSpec(
            (self.in_channels, self.out_channels, self.modes_pad),
            lambda bi: (0, 0, 0), **resident_kwargs))
        operands.append(self._w_kernel)

        out_spec = pl.BlockSpec((self.out_channels, bt, self.out_pad), lambda bi: (0, bi, 0))
        kernel = _make_waveconv_kernel(self.level, self.in_channels, bt, self.lo_pads)

        yt = pl.pallas_call(
            kernel,
            out_shape=jax.ShapeDtypeStruct(
                (self.out_channels, b_pad, self.out_pad), jnp.float32),
            grid=(b_pad // bt,),
            in_specs=in_specs,
            out_specs=out_spec,
            compiler_params=pltpu.CompilerParams(
                dimension_semantics=("parallel",),
                vmem_limit_bytes=self._vmem_limit_bytes(bt, single_buffer_resident)),
        )(*operands)

        # Crop the lane padding / batch padding and go back to (B, C, L_out).
        return jnp.transpose(yt[:, :b, :self.out_length], (1, 0, 2))

    def __call__(self, x):
        try:
            return self._forward(x, single_buffer_resident=True)
        except Exception:
            # pipeline_mode=pl.Buffered(1) unsupported by this JAX/TPU lowering:
            # fall back to default double-buffered resident operands (correctness identical).
            return self._forward(x, single_buffer_resident=False)


# ----------------------------------------------------------------------------- pure-JAX ref
def _reference_forward(module, x):
    """f32 reference with the exact (unpadded) operators — mirrors the PyTorch forward."""
    cur = x.astype(jnp.float32)
    details = []
    for j in range(module.level):
        a_lo, a_hi = module.ref_a[j]
        details.append(jnp.einsum('bcl,lm->bcm', cur, a_hi))
        cur = jnp.einsum('bcl,lm->bcm', cur, a_lo)
    cur = jnp.einsum('bix,iox->box', cur, module.weights1)
    details[-1] = jnp.einsum('bix,iox->box', details[-1], module.weights1)
    y = cur
    for step, j in enumerate(range(module.level - 1, -1, -1)):
        s_lo, s_hi = module.ref_s[step]
        y = (jnp.einsum('bcl,lm->bcm', y, s_lo)
             + jnp.einsum('bcm,mn->bcn', details[j], s_hi))
    return y


if __name__ == "__main__":
    key = jax.random.PRNGKey(0)
    k_w, k_x = jax.random.split(key)

    batch, channels, length, level = 2, 4, 64, 2
    module = WaveConv1d(channels, channels, level, length, k_w)
    x = jax.random.normal(k_x, (batch, channels, length), dtype=jnp.float32)

    y = module(x)
    jax.block_until_ready(y)

    y_ref = _reference_forward(module, x)
    assert module.out_length == length, module.out_length
    assert y.shape == y_ref.shape == (batch, channels, module.out_length), y.shape
    # Kernel uses bf16 operands with f32 accumulation -> compare at bf16-level tolerance.
    max_err = float(jnp.max(jnp.abs(y - y_ref)))
    assert jnp.allclose(y, y_ref, atol=5e-2, rtol=5e-2), f"mismatch, max abs err {max_err}"

    print("KERNEL_OK")
</pallas_src>

<mosaic_0001>
module attributes {stable_mosaic.version = 11 : i64} {
  func.func @kernel(%arg0: i32, %arg1: memref<4x8x64xbf16, #tpu.memory_space<vmem>>, %arg2: memref<64x256xbf16, #tpu.memory_space<vmem>>, %arg3: memref<128x256xbf16, #tpu.memory_space<vmem>>, %arg4: memref<256x128xbf16, #tpu.memory_space<vmem>>, %arg5: memref<256x128xbf16, #tpu.memory_space<vmem>>, %arg6: memref<4x4x128xbf16, #tpu.memory_space<vmem>>, %arg7: memref<4x8x128xf32, #tpu.memory_space<vmem>>) attributes {dimension_semantics = [#tpu.dimension_semantics<parallel>], iteration_bounds = array<i64: 1>, scalar_prefetch = 0 : i64, scratch_operands = 0 : i64, tpu.core_type = #tpu.core_type<tc>, window_params = [{transform_indices = @transform_0, window_bounds = array<i64: 4, 8, 64>}, {pipeline_mode = #tpu.pipeline_mode<synchronous>, transform_indices = @transform_1, window_bounds = array<i64: 64, 256>}, {pipeline_mode = #tpu.pipeline_mode<synchronous>, transform_indices = @transform_2, window_bounds = array<i64: 128, 256>}, {pipeline_mode = #tpu.pipeline_mode<synchronous>, transform_indices = @transform_3, window_bounds = array<i64: 256, 128>}, {pipeline_mode = #tpu.pipeline_mode<synchronous>, transform_indices = @transform_4, window_bounds = array<i64: 256, 128>}, {pipeline_mode = #tpu.pipeline_mode<synchronous>, transform_indices = @transform_5, window_bounds = array<i64: 4, 4, 128>}, {transform_indices = @transform_6, window_bounds = array<i64: 4, 8, 128>}]} {
    %c0 = arith.constant 0 : index
    %c0_0 = arith.constant 0 : index
    %c0_1 = arith.constant 0 : index
    %0 = vector.load %arg1[%c0, %c0_0, %c0_1] : memref<4x8x64xbf16, #tpu.memory_space<vmem>>, vector<4x8x64xbf16>
    %1 = vector.shape_cast %0 : vector<4x8x64xbf16> to vector<32x64xbf16>
    %c0_2 = arith.constant 0 : index
    %c0_3 = arith.constant 0 : index
    %2 = vector.load %arg2[%c0_2, %c0_3] : memref<64x256xbf16, #tpu.memory_space<vmem>>, vector<64x256xbf16>
    %cst = arith.constant dense<0.000000e+00> : vector<32x256xf32>
    %3 = tpu.matmul %1, %2, %cst {dimension_numbers = #tpu.dot_dimension_numbers<[1], [0], [0], [1], [0, 0, 1, 1], [], []>} : vector<32x64xbf16>, vector<64x256xbf16>, vector<32x256xf32> -> vector<32x256xf32>
    %4 = vector.extract_strided_slice %3 {offsets = [0, 128], sizes = [32, 128], strides = [1, 1]} : vector<32x256xf32> to vector<32x128xf32>
    %5 = vector.extract_strided_slice %3 {offsets = [0, 0], sizes = [32, 128], strides = [1, 1]} : vector<32x256xf32> to vector<32x128xf32>
    %c0_4 = arith.constant 0 : index
    %c0_5 = arith.constant 0 : index
    %6 = vector.load %arg3[%c0_4, %c0_5] : memref<128x256xbf16, #tpu.memory_space<vmem>>, vector<128x256xbf16>
    %7 = arith.truncf %5 : vector<32x128xf32> to vector<32x128xbf16>
    %cst_6 = arith.constant dense<0.000000e+00> : vector<32x256xf32>
    %8 = tpu.matmul %7, %6, %cst_6 {dimension_numbers = #tpu.dot_dimension_numbers<[1], [0], [0], [1], [0, 0, 1, 1], [], []>} : vector<32x128xbf16>, vector<128x256xbf16>, vector<32x256xf32> -> vector<32x256xf32>
    %9 = vector.extract_strided_slice %8 {offsets = [0, 128], sizes = [32, 128], strides = [1, 1]} : vector<32x256xf32> to vector<32x128xf32>
    %10 = vector.extract_strided_slice %8 {offsets = [0, 0], sizes = [32, 128], strides = [1, 1]} : vector<32x256xf32> to vector<32x128xf32>
    %c0_7 = arith.constant 0 : index
    %c0_8 = arith.constant 0 : index
    %c0_9 = arith.constant 0 : index
    %11 = vector.load %arg6[%c0_7, %c0_8, %c0_9] : memref<4x4x128xbf16, #tpu.memory_space<vmem>>, vector<1x1x128xbf16>
    %12 = vector.shape_cast %11 : vector<1x1x128xbf16> to vector<1x128xbf16>
    %13 = vector.extract_strided_slice %10 {offsets = [0, 0], sizes = [8, 128], strides = [1, 1]} : vector<32x128xf32> to vector<8x128xf32>
    %14 = arith.extf %12 : vector<1x128xbf16> to vector<1x128xf32>
    %15 = vector.broadcast %14 : vector<1x128xf32> to vector<8x128xf32>
    %16 = arith.mulf %13, %15 : vector<8x128xf32>
    %c1 = arith.constant 1 : index
    %c0_10 = arith.constant 0 : index
    %c0_11 = arith.constant 0 : index
    %17 = vector.load %arg6[%c1, %c0_10, %c0_11] : memref<4x4x128xbf16, #tpu.memory_space<vmem>>, vector<1x1x128xbf16>
    %18 = vector.shape_cast %17 : vector<1x1x128xbf16> to vector<1x128xbf16>
    %19 = vector.extract_strided_slice %10 {offsets = [8, 0], sizes = [8, 128], strides = [1, 1]} : vector<32x128xf32> to vector<8x128xf32>
    %20 = arith.extf %18 : vector<1x128xbf16> to vector<1x128xf32>
    %21 = vector.broadcast %20 : vector<1x128xf32> to vector<8x128xf32>
    %22 = arith.mulf %19, %21 : vector<8x128xf32>
    %c2 = arith.constant 2 : index
    %c0_12 = arith.constant 0 : index
    %c0_13 = arith.constant 0 : index
    %23 = vector.load %arg6[%c2, %c0_12, %c0_13] : memref<4x4x128xbf16, #tpu.memory_space<vmem>>, vector<1x1x128xbf16>
    %24 = vector.shape_cast %23 : vector<1x1x128xbf16> to vector<1x128xbf16>
    %25 = vector.extract_strided_slice %10 {offsets = [16, 0], sizes = [8, 128], strides = [1, 1]} : vector<32x128xf32> to vector<8x128xf32>
    %26 = arith.extf %24 : vector<1x128xbf16> to vector<1x128xf32>
    %27 = vector.broadcast %26 : vector<1x128xf32> to vector<8x128xf32>
    %28 = arith.mulf %25, %27 : vector<8x128xf32>
    %29 = arith.addf %16, %28 : vector<8x128xf32>
    %c3 = arith.constant 3 : index
    %c0_14 = arith.constant 0 : index
    %c0_15 = arith.constant 0 : index
    %30 = vector.load %arg6[%c3, %c0_14, %c0_15] : memref<4x4x128xbf16, #tpu.memory_space<vmem>>, vector<1x1x128xbf16>
    %31 = vector.shape_cast %30 : vector<1x1x128xbf16> to vector<1x128xbf16>
    %32 = vector.extract_strided_slice %10 {offsets = [24, 0], sizes = [8, 128], strides = [1, 1]} : vector<32x128xf32> to vector<8x128xf32>
    %33 = arith.extf %31 : vector<1x128xbf16> to vector<1x128xf32>
    %34 = vector.broadcast %33 : vector<1x128xf32> to vector<8x128xf32>
    %35 = arith.mulf %32, %34 : vector<8x128xf32>
    %36 = arith.addf %22, %35 : vector<8x128xf32>
    %37 = arith.addf %29, %36 : vector<8x128xf32>
    %c0_16 = arith.constant 0 : index
    %c1_17 = arith.constant 1 : index
    %c0_18 = arith.constant 0 : index
    %38 = vector.load %arg6[%c0_16, %c1_17, %c0_18] : memref<4x4x128xbf16, #tpu.memory_space<vmem>>, vector<1x1x128xbf16>
    %39 = vector.shape_cast %38 : vector<1x1x128xbf16> to vector<1x128xbf16>
    %40 = vector.extract_strided_slice %10 {offsets = [0, 0], sizes = [8, 128], strides = [1, 1]} : vector<32x128xf32> to vector<8x128xf32>
    %41 = arith.extf %39 : vector<1x128xbf16> to vector<1x128xf32>
    %42 = vector.broadcast %41 : vector<1x128xf32> to vector<8x128xf32>
    %43 = arith.mulf %40, %42 : vector<8x128xf32>
    %c1_19 = arith.constant 1 : index
    %c1_20 = arith.constant 1 : index
    %c0_21 = arith.constant 0 : index
    %44 = vector.load %arg6[%c1_19, %c1_20, %c0_21] : memref<4x4x128xbf16, #tpu.memory_space<vmem>>, vector<1x1x128xbf16>
    %45 = vector.shape_cast %44 : vector<1x1x128xbf16> to vector<1x128xbf16>
    %46 = vector.extract_strided_slice %10 {offsets = [8, 0], sizes = [8, 128], strides = [1, 1]} : vector<32x128xf32> to vector<8x128xf32>
    %47 = arith.extf %45 : vector<1x128xbf16> to vector<1x128xf32>
    %48 = vector.broadcast %47 : vector<1x128xf32> to vector<8x128xf32>
    %49 = arith.mulf %46, %48 : vector<8x128xf32>
    %c2_22 = arith.constant 2 : index
    %c1_23 = arith.constant 1 : index
    %c0_24 = arith.constant 0 : index
    %50 = vector.load %arg6[%c2_22, %c1_23, %c0_24] : memref<4x4x128xbf16, #tpu.memory_space<vmem>>, vector<1x1x128xbf16>
    %51 = vector.shape_cast %50 : vector<1x1x128xbf16> to vector<1x128xbf16>
    %52 = vector.extract_strided_slice %10 {offsets = [16, 0], sizes = [8, 128], strides = [1, 1]} : vector<32x128xf32> to vector<8x128xf32>
    %53 = arith.extf %51 : vector<1x128xbf16> to vector<1x128xf32>
    %54 = vector.broadcast %53 : vector<1x128xf32> to vector<8x128xf32>
    %55 = arith.mulf %52, %54 : vector<8x128xf32>
    %56 = arith.addf %43, %55 : vector<8x128xf32>
    %c3_25 = arith.constant 3 : index
    %c1_26 = arith.constant 1 : index
    %c0_27 = arith.constant 0 : index
    %57 = vector.load %arg6[%c3_25, %c1_26, %c0_27] : memref<4x4x128xbf16, #tpu.memory_space<vmem>>, vector<1x1x128xbf16>
    %58 = vector.shape_cast %57 : vector<1x1x128xbf16> to vector<1x128xbf16>
    %59 = vector.extract_strided_slice %10 {offsets = [24, 0], sizes = [8, 128], strides = [1, 1]} : vector<32x128xf32> to vector<8x128xf32>
    %60 = arith.extf %58 : vector<1x128xbf16> to vector<1x128xf32>
    %61 = vector.broadcast %60 : vector<1x128xf32> to vector<8x128xf32>
    %62 = arith.mulf %59, %61 : vector<8x128xf32>
    %63 = arith.addf %49, %62 : vector<8x128xf32>
    %64 = arith.addf %56, %63 : vector<8x128xf32>
    %c0_28 = arith.constant 0 : index
    %c2_29 = arith.constant 2 : index
    %c0_30 = arith.constant 0 : index
    %65 = vector.load %arg6[%c0_28, %c2_29, %c0_30] : memref<4x4x128xbf16, #tpu.memory_space<vmem>>, vector<1x1x128xbf16>
    %66 = vector.shape_cast %65 : vector<1x1x128xbf16> to vector<1x128xbf16>
    %67 = vector.extract_strided_slice %10 {offsets = [0, 0], sizes = [8, 128], strides = [1, 1]} : vector<32x128xf32> to vector<8x128xf32>
    %68 = arith.extf %66 : vector<1x128xbf16> to vector<1x128xf32>
    %69 = vector.broadcast %68 : vector<1x128xf32> to vector<8x128xf32>
    %70 = arith.mulf %67, %69 : vector<8x128xf32>
    %c1_31 = arith.constant 1 : index
    %c2_32 = arith.constant 2 : index
    %c0_33 = arith.constant 0 : index
    %71 = vector.load %arg6[%c1_31, %c2_32, %c0_33] : memref<4x4x128xbf16, #tpu.memory_space<vmem>>, vector<1x1x128xbf16>
    %72 = vector.shape_cast %71 : vector<1x1x128xbf16> to vector<1x128xbf16>
    %73 = vector.extract_strided_slice %10 {offsets = [8, 0], sizes = [8, 128], strides = [1, 1]} : vector<32x128xf32> to vector<8x128xf32>
    %74 = arith.extf %72 : vector<1x128xbf16> to vector<1x128xf32>
    %75 = vector.broadcast %74 : vector<1x128xf32> to vector<8x128xf32>
    %76 = arith.mulf %73, %75 : vector<8x128xf32>
    %c2_34 = arith.constant 2 : index
    %c2_35 = arith.constant 2 : index
    %c0_36 = arith.constant 0 : index
    %77 = vector.load %arg6[%c2_34, %c2_35, %c0_36] : memref<4x4x128xbf16, #tpu.memory_space<vmem>>, vector<1x1x128xbf16>
    %78 = vector.shape_cast %77 : vector<1x1x128xbf16> to vector<1x128xbf16>
    %79 = vector.extract_strided_slice %10 {offsets = [16, 0], sizes = [8, 128], strides = [1, 1]} : vector<32x128xf32> to vector<8x128xf32>
    %80 = arith.extf %78 : vector<1x128xbf16> to vector<1x128xf32>
    %81 = vector.broadcast %80 : vector<1x128xf32> to vector<8x128xf32>
    %82 = arith.mulf %79, %81 : vector<8x128xf32>
    %83 = arith.addf %70, %82 : vector<8x128xf32>
    %c3_37 = arith.constant 3 : index
    %c2_38 = arith.constant 2 : index
    %c0_39 = arith.constant 0 : index
    %84 = vector.load %arg6[%c3_37, %c2_38, %c0_39] : memref<4x4x128xbf16, #tpu.memory_space<vmem>>, vector<1x1x128xbf16>
    %85 = vector.shape_cast %84 : vector<1x1x128xbf16> to vector<1x128xbf16>
    %86 = vector.extract_strided_slice %10 {offsets = [24, 0], sizes = [8, 128], strides = [1, 1]} : vector<32x128xf32> to vector<8x128xf32>
    %87 = arith.extf %85 : vector<1x128xbf16> to vector<1x128xf32>
    %88 = vector.broadcast %87 : vector<1x128xf32> to vector<8x128xf32>
    %89 = arith.mulf %86, %88 : vector<8x128xf32>
    %90 = arith.addf %76, %89 : vector<8x128xf32>
    %91 = arith.addf %83, %90 : vector<8x128xf32>
    %c0_40 = arith.constant 0 : index
    %c3_41 = arith.constant 3 : index
    %c0_42 = arith.constant 0 : index
    %92 = vector.load %arg6[%c0_40, %c3_41, %c0_42] : memref<4x4x128xbf16, #tpu.memory_space<vmem>>, vector<1x1x128xbf16>
    %93 = vector.shape_cast %92 : vector<1x1x128xbf16> to vector<1x128xbf16>
    %94 = vector.extract_strided_slice %10 {offsets = [0, 0], sizes = [8, 128], strides = [1, 1]} : vector<32x128xf32> to vector<8x128xf32>
    %95 = arith.extf %93 : vector<1x128xbf16> to vector<1x128xf32>
    %96 = vector.broadcast %95 : vector<1x128xf32> to vector<8x128xf32>
    %97 = arith.mulf %94, %96 : vector<8x128xf32>
    %c1_43 = arith.constant 1 : index
    %c3_44 = arith.constant 3 : index
    %c0_45 = arith.constant 0 : index
    %98 = vector.load %arg6[%c1_43, %c3_44, %c0_45] : memref<4x4x128xbf16, #tpu.memory_space<vmem>>, vector<1x1x128xbf16>
    %99 = vector.shape_cast %98 : vector<1x1x128xbf16> to vector<1x128xbf16>
    %100 = vector.extract_strided_slice %10 {offsets = [8, 0], sizes = [8, 128], strides = [1, 1]} : vector<32x128xf32> to vector<8x128xf32>
    %101 = arith.extf %99 : vector<1x128xbf16> to vector<1x128xf32>
    %102 = vector.broadcast %101 : vector<1x128xf32> to vector<8x128xf32>
    %103 = arith.mulf %100, %102 : vector<8x128xf32>
    %c2_46 = arith.constant 2 : index
    %c3_47 = arith.constant 3 : index
    %c0_48 = arith.constant 0 : index
    %104 = vector.load %arg6[%c2_46, %c3_47, %c0_48] : memref<4x4x128xbf16, #tpu.memory_space<vmem>>, vector<1x1x128xbf16>
    %105 = vector.shape_cast %104 : vector<1x1x128xbf16> to vector<1x128xbf16>
    %106 = vector.extract_strided_slice %10 {offsets = [16, 0], sizes = [8, 128], strides = [1, 1]} : vector<32x128xf32> to vector<8x128xf32>
    %107 = arith.extf %105 : vector<1x128xbf16> to vector<1x128xf32>
    %108 = vector.broadcast %107 : vector<1x128xf32> to vector<8x128xf32>
    %109 = arith.mulf %106, %108 : vector<8x128xf32>
    %110 = arith.addf %97, %109 : vector<8x128xf32>
    %c3_49 = arith.constant 3 : index
    %c3_50 = arith.constant 3 : index
    %c0_51 = arith.constant 0 : index
    %111 = vector.load %arg6[%c3_49, %c3_50, %c0_51] : memref<4x4x128xbf16, #tpu.memory_space<vmem>>, vector<1x1x128xbf16>
    %112 = vector.shape_cast %111 : vector<1x1x128xbf16> to vector<1x128xbf16>
    %113 = vector.extract_strided_slice %10 {offsets = [24, 0], sizes = [8, 128], strides = [1, 1]} : vector<32x128xf32> to vector<8x128xf32>
    %114 = arith.extf %112 : vector<1x128xbf16> to vector<1x128xf32>
    %115 = vector.broadcast %114 : vector<1x128xf32> to vector<8x128xf32>
    %116 = arith.mulf %113, %115 : vector<8x128xf32>
    %117 = arith.addf %103, %116 : vector<8x128xf32>
    %118 = arith.addf %110, %117 : vector<8x128xf32>
    %119 = tpu.concatenate %37, %64, %91, %118 in 0 : vector<8x128xf32>, vector<8x128xf32>, vector<8x128xf32>, vector<8x128xf32> -> vector<32x128xf32>
    %c0_52 = arith.constant 0 : index
    %c0_53 = arith.constant 0 : index
    %c0_54 = arith.constant 0 : index
    %120 = vector.load %arg6[%c0_52, %c0_53, %c0_54] : memref<4x4x128xbf16, #tpu.memory_space<vmem>>, vector<1x1x128xbf16>
    %121 = vector.shape_cast %120 : vector<1x1x128xbf16> to vector<1x128xbf16>
    %122 = vector.extract_strided_slice %9 {offsets = [0, 0], sizes = [8, 128], strides = [1, 1]} : vector<32x128xf32> to vector<8x128xf32>
    %123 = arith.extf %121 : vector<1x128xbf16> to vector<1x128xf32>
    %124 = vector.broadcast %123 : vector<1x128xf32> to vector<8x128xf32>
    %125 = arith.mulf %122, %124 : vector<8x128xf32>
    %c1_55 = arith.constant 1 : index
    %c0_56 = arith.constant 0 : index
    %c0_57 = arith.constant 0 : index
    %126 = vector.load %arg6[%c1_55, %c0_56, %c0_57] : memref<4x4x128xbf16, #tpu.memory_space<vmem>>, vector<1x1x128xbf16>
    %127 = vector.shape_cast %126 : vector<1x1x128xbf16> to vector<1x128xbf16>
    %128 = vector.extract_strided_slice %9 {offsets = [8, 0], sizes = [8, 128], strides = [1, 1]} : vector<32x128xf32> to vector<8x128xf32>
    %129 = arith.extf %127 : vector<1x128xbf16> to vector<1x128xf32>
    %130 = vector.broadcast %129 : vector<1x128xf32> to vector<8x128xf32>
    %131 = arith.mulf %128, %130 : vector<8x128xf32>
    %c2_58 = arith.constant 2 : index
    %c0_59 = arith.constant 0 : index
    %c0_60 = arith.constant 0 : index
    %132 = vector.load %arg6[%c2_58, %c0_59, %c0_60] : memref<4x4x128xbf16, #tpu.memory_space<vmem>>, vector<1x1x128xbf16>
    %133 = vector.shape_cast %132 : vector<1x1x128xbf16> to vector<1x128xbf16>
    %134 = vector.extract_strided_slice %9 {offsets = [16, 0], sizes = [8, 128], strides = [1, 1]} : vector<32x128xf32> to vector<8x128xf32>
    %135 = arith.extf %133 : vector<1x128xbf16> to vector<1x128xf32>
    %136 = vector.broadcast %135 : vector<1x128xf32> to vector<8x128xf32>
    %137 = arith.mulf %134, %136 : vector<8x128xf32>
    %138 = arith.addf %125, %137 : vector<8x128xf32>
    %c3_61 = arith.constant 3 : index
    %c0_62 = arith.constant 0 : index
    %c0_63 = arith.constant 0 : index
    %139 = vector.load %arg6[%c3_61, %c0_62, %c0_63] : memref<4x4x128xbf16, #tpu.memory_space<vmem>>, vector<1x1x128xbf16>
    %140 = vector.shape_cast %139 : vector<1x1x128xbf16> to vector<1x128xbf16>
    %141 = vector.extract_strided_slice %9 {offsets = [24, 0], sizes = [8, 128], strides = [1, 1]} : vector<32x128xf32> to vector<8x128xf32>
    %142 = arith.extf %140 : vector<1x128xbf16> to vector<1x128xf32>
    %143 = vector.broadcast %142 : vector<1x128xf32> to vector<8x128xf32>
    %144 = arith.mulf %141, %143 : vector<8x128xf32>
    %145 = arith.addf %131, %144 : vector<8x128xf32>
    %146 = arith.addf %138, %145 : vector<8x128xf32>
    %c0_64 = arith.constant 0 : index
    %c1_65 = arith.constant 1 : index
    %c0_66 = arith.constant 0 : index
    %147 = vector.load %arg6[%c0_64, %c1_65, %c0_66] : memref<4x4x128xbf16, #tpu.memory_space<vmem>>, vector<1x1x128xbf16>
    %148 = vector.shape_cast %147 : vector<1x1x128xbf16> to vector<1x128xbf16>
    %149 = vector.extract_strided_slice %9 {offsets = [0, 0], sizes = [8, 128], strides = [1, 1]} : vector<32x128xf32> to vector<8x128xf32>
    %150 = arith.extf %148 : vector<1x128xbf16> to vector<1x128xf32>
    %151 = vector.broadcast %150 : vector<1x128xf32> to vector<8x128xf32>
    %152 = arith.mulf %149, %151 : vector<8x128xf32>
    %c1_67 = arith.constant 1 : index
    %c1_68 = arith.constant 1 : index
    %c0_69 = arith.constant 0 : index
    %153 = vector.load %arg6[%c1_67, %c1_68, %c0_69] : memref<4x4x128xbf16, #tpu.memory_space<vmem>>, vector<1x1x128xbf16>
    %154 = vector.shape_cast %153 : vector<1x1x128xbf16> to vector<1x128xbf16>
    %155 = vector.extract_strided_slice %9 {offsets = [8, 0], sizes = [8, 128], strides = [1, 1]} : vector<32x128xf32> to vector<8x128xf32>
    %156 = arith.extf %154 : vector<1x128xbf16> to vector<1x128xf32>
    %157 = vector.broadcast %156 : vector<1x128xf32> to vector<8x128xf32>
    %158 = arith.mulf %155, %157 : vector<8x128xf32>
    %c2_70 = arith.constant 2 : index
    %c1_71 = arith.constant 1 : index
    %c0_72 = arith.constant 0 : index
    %159 = vector.load %arg6[%c2_70, %c1_71, %c0_72] : memref<4x4x128xbf16, #tpu.memory_space<vmem>>, vector<1x1x128xbf16>
    %160 = vector.shape_cast %159 : vector<1x1x128xbf16> to vector<1x128xbf16>
    %161 = vector.extract_strided_slice %9 {offsets = [16, 0], sizes = [8, 128], strides = [1, 1]} : vector<32x128xf32> to vector<8x128xf32>
    %162 = arith.extf %160 : vector<1x128xbf16> to vector<1x128xf32>
    %163 = vector.broadcast %162 : vector<1x128xf32> to vector<8x128xf32>
    %164 = arith.mulf %161, %163 : vector<8x128xf32>
    %165 = arith.addf %152, %164 : vector<8x128xf32>
    %c3_73 = arith.constant 3 : index
    %c1_74 = arith.constant 1 : index
    %c0_75 = arith.constant 0 : index
    %166 = vector.load %arg6[%c3_73, %c1_74, %c0_75] : memref<4x4x128xbf16, #tpu.memory_space<vmem>>, vector<1x1x128xbf16>
    %167 = vector.shape_cast %166 : vector<1x1x128xbf16> to vector<1x128xbf16>
    %168 = vector.extract_strided_slice %9 {offsets = [24, 0], sizes = [8, 128], strides = [1, 1]} : vector<32x128xf32> to vector<8x128xf32>
    %169 = arith.extf %167 : vector<1x128xbf16> to vector<1x128xf32>
    %170 = vector.broadcast %169 : vector<1x128xf32> to vector<8x128xf32>
    %171 = arith.mulf %168, %170 : vector<8x128xf32>
    %172 = arith.addf %158, %171 : vector<8x128xf32>
    %173 = arith.addf %165, %172 : vector<8x128xf32>
    %c0_76 = arith.constant 0 : index
    %c2_77 = arith.constant 2 : index
    %c0_78 = arith.constant 0 : index
    %174 = vector.load %arg6[%c0_76, %c2_77, %c0_78] : memref<4x4x128xbf16, #tpu.memory_space<vmem>>, vector<1x1x128xbf16>
    %175 = vector.shape_cast %174 : vector<1x1x128xbf16> to vector<1x128xbf16>
    %176 = vector.extract_strided_slice %9 {offsets = [0, 0], sizes = [8, 128], strides = [1, 1]} : vector<32x128xf32> to vector<8x128xf32>
    %177 = arith.extf %175 : vector<1x128xbf16> to vector<1x128xf32>
    %178 = vector.broadcast %177 : vector<1x128xf32> to vector<8x128xf32>
    %179 = arith.mulf %176, %178 : vector<8x128xf32>
    %c1_79 = arith.constant 1 : index
    %c2_80 = arith.constant 2 : index
    %c0_81 = arith.constant 0 : index
    %180 = vector.load %arg6[%c1_79, %c2_80, %c0_81] : memref<4x4x128xbf16, #tpu.memory_space<vmem>>, vector<1x1x128xbf16>
    %181 = vector.shape_cast %180 : vector<1x1x128xbf16> to vector<1x128xbf16>
    %182 = vector.extract_strided_slice %9 {offsets = [8, 0], sizes = [8, 128], strides = [1, 1]} : vector<32x128xf32> to vector<8x128xf32>
    %183 = arith.extf %181 : vector<1x128xbf16> to vector<1x128xf32>
    %184 = vector.broadcast %183 : vector<1x128xf32> to vector<8x128xf32>
    %185 = arith.mulf %182, %184 : vector<8x128xf32>
    %c2_82 = arith.constant 2 : index
    %c2_83 = arith.constant 2 : index
    %c0_84 = arith.constant 0 : index
    %186 = vector.load %arg6[%c2_82, %c2_83, %c0_84] : memref<4x4x128xbf16, #tpu.memory_space<vmem>>, vector<1x1x128xbf16>
    %187 = vector.shape_cast %186 : vector<1x1x128xbf16> to vector<1x128xbf16>
    %188 = vector.extract_strided_slice %9 {offsets = [16, 0], sizes = [8, 128], strides = [1, 1]} : vector<32x128xf32> to vector<8x128xf32>
    %189 = arith.extf %187 : vector<1x128xbf16> to vector<1x128xf32>
    %190 = vector.broadcast %189 : vector<1x128xf32> to vector<8x128xf32>
    %191 = arith.mulf %188, %190 : vector<8x128xf32>
    %192 = arith.addf %179, %191 : vector<8x128xf32>
    %c3_85 = arith.constant 3 : index
    %c2_86 = arith.constant 2 : index
    %c0_87 = arith.constant 0 : index
    %193 = vector.load %arg6[%c3_85, %c2_86, %c0_87] : memref<4x4x128xbf16, #tpu.memory_space<vmem>>, vector<1x1x128xbf16>
    %194 = vector.shape_cast %193 : vector<1x1x128xbf16> to vector<1x128xbf16>
    %195 = vector.extract_strided_slice %9 {offsets = [24, 0], sizes = [8, 128], strides = [1, 1]} : vector<32x128xf32> to vector<8x128xf32>
    %196 = arith.extf %194 : vector<1x128xbf16> to vector<1x128xf32>
    %197 = vector.broadcast %196 : vector<1x128xf32> to vector<8x128xf32>
    %198 = arith.mulf %195, %197 : vector<8x128xf32>
    %199 = arith.addf %185, %198 : vector<8x128xf32>
    %200 = arith.addf %192, %199 : vector<8x128xf32>
    %c0_88 = arith.constant 0 : index
    %c3_89 = arith.constant 3 : index
    %c0_90 = arith.constant 0 : index
    %201 = vector.load %arg6[%c0_88, %c3_89, %c0_90] : memref<4x4x128xbf16, #tpu.memory_space<vmem>>, vector<1x1x128xbf16>
    %202 = vector.shape_cast %201 : vector<1x1x128xbf16> to vector<1x128xbf16>
    %203 = vector.extract_strided_slice %9 {offsets = [0, 0], sizes = [8, 128], strides = [1, 1]} : vector<32x128xf32> to vector<8x128xf32>
    %204 = arith.extf %202 : vector<1x128xbf16> to vector<1x128xf32>
    %205 = vector.broadcast %204 : vector<1x128xf32> to vector<8x128xf32>
    %206 = arith.mulf %203, %205 : vector<8x128xf32>
    %c1_91 = arith.constant 1 : index
    %c3_92 = arith.constant 3 : index
    %c0_93 = arith.constant 0 : index
    %207 = vector.load %arg6[%c1_91, %c3_92, %c0_93] : memref<4x4x128xbf16, #tpu.memory_space<vmem>>, vector<1x1x128xbf16>
    %208 = vector.shape_cast %207 : vector<1x1x128xbf16> to vector<1x128xbf16>
    %209 = vector.extract_strided_slice %9 {offsets = [8, 0], sizes = [8, 128], strides = [1, 1]} : vector<32x128xf32> to vector<8x128xf32>
    %210 = arith.extf %208 : vector<1x128xbf16> to vector<1x128xf32>
    %211 = vector.broadcast %210 : vector<1x128xf32> to vector<8x128xf32>
    %212 = arith.mulf %209, %211 : vector<8x128xf32>
    %c2_94 = arith.constant 2 : index
    %c3_95 = arith.constant 3 : index
    %c0_96 = arith.constant 0 : index
    %213 = vector.load %arg6[%c2_94, %c3_95, %c0_96] : memref<4x4x128xbf16, #tpu.memory_space<vmem>>, vector<1x1x128xbf16>
    %214 = vector.shape_cast %213 : vector<1x1x128xbf16> to vector<1x128xbf16>
    %215 = vector.extract_strided_slice %9 {offsets = [16, 0], sizes = [8, 128], strides = [1, 1]} : vector<32x128xf32> to vector<8x128xf32>
    %216 = arith.extf %214 : vector<1x128xbf16> to vector<1x128xf32>
    %217 = vector.broadcast %216 : vector<1x128xf32> to vector<8x128xf32>
    %218 = arith.mulf %215, %217 : vector<8x128xf32>
    %219 = arith.addf %206, %218 : vector<8x128xf32>
    %c3_97 = arith.constant 3 : index
    %c3_98 = arith.constant 3 : index
    %c0_99 = arith.constant 0 : index
    %220 = vector.load %arg6[%c3_97, %c3_98, %c0_99] : memref<4x4x128xbf16, #tpu.memory_space<vmem>>, vector<1x1x128xbf16>
    %221 = vector.shape_cast %220 : vector<1x1x128xbf16> to vector<1x128xbf16>
    %222 = vector.extract_strided_slice %9 {offsets = [24, 0], sizes = [8, 128], strides = [1, 1]} : vector<32x128xf32> to vector<8x128xf32>
    %223 = arith.extf %221 : vector<1x128xbf16> to vector<1x128xf32>
    %224 = vector.broadcast %223 : vector<1x128xf32> to vector<8x128xf32>
    %225 = arith.mulf %222, %224 : vector<8x128xf32>
    %226 = arith.addf %212, %225 : vector<8x128xf32>
    %227 = arith.addf %219, %226 : vector<8x128xf32>
    %228 = tpu.concatenate %146, %173, %200, %227 in 0 : vector<8x128xf32>, vector<8x128xf32>, vector<8x128xf32>, vector<8x128xf32> -> vector<32x128xf32>
    %c0_100 = arith.constant 0 : index
    %c0_101 = arith.constant 0 : index
    %229 = vector.load %arg4[%c0_100, %c0_101] : memref<256x128xbf16, #tpu.memory_space<vmem>>, vector<256x128xbf16>
    %230 = arith.truncf %119 : vector<32x128xf32> to vector<32x128xbf16>
    %231 = arith.truncf %228 : vector<32x128xf32> to vector<32x128xbf16>
    %232 = tpu.concatenate %230, %231 in 1 : vector<32x128xbf16>, vector<32x128xbf16> -> vector<32x256xbf16>
    %cst_102 = arith.constant dense<0.000000e+00> : vector<32x128xf32>
    %233 = tpu.matmul %232, %229, %cst_102 {dimension_numbers = #tpu.dot_dimension_numbers<[1], [0], [0], [1], [0, 0, 1, 1], [], []>} : vector<32x256xbf16>, vector<256x128xbf16>, vector<32x128xf32> -> vector<32x128xf32>
    %c0_103 = arith.constant 0 : index
    %c0_104 = arith.constant 0 : index
    %234 = vector.load %arg5[%c0_103, %c0_104] : memref<256x128xbf16, #tpu.memory_space<vmem>>, vector<256x128xbf16>
    %235 = arith.truncf %233 : vector<32x128xf32> to vector<32x128xbf16>
    %236 = arith.truncf %4 : vector<32x128xf32> to vector<32x128xbf16>
    %237 = tpu.concatenate %235, %236 in 1 : vector<32x128xbf16>, vector<32x128xbf16> -> vector<32x256xbf16>
    %cst_105 = arith.constant dense<0.000000e+00> : vector<32x128xf32>
    %238 = tpu.matmul %237, %234, %cst_105 {dimension_numbers = #tpu.dot_dimension_numbers<[1], [0], [0], [1], [0, 0, 1, 1], [], []>} : vector<32x256xbf16>, vector<256x128xbf16>, vector<32x128xf32> -> vector<32x128xf32>
    %239 = vector.shape_cast %238 : vector<32x128xf32> to vector<4x8x128xf32>
    %c0_106 = arith.constant 0 : index
    %c0_107 = arith.constant 0 : index
    %c0_108 = arith.constant 0 : index
    %240 = vector.load %arg7[%c0_106, %c0_107, %c0_108] : memref<4x8x128xf32, #tpu.memory_space<vmem>>, vector<4x8x128xf32>
    tpu.vector_store %arg7[%c0_106, %c0_107, %c0_108], %239 {strides = array<i32>} : memref<4x8x128xf32, #tpu.memory_space<vmem>>, vector<4x8x128xf32>,
    return
  }
  func.func @transform_0(%arg0: i32) -> (i32, i32, i32) {
    %c0_i32 = arith.constant 0 : i32
    %c0_i32_0 = arith.constant 0 : i32
    %c0_i32_1 = arith.constant 0 : i32
    return %c0_i32, %arg0, %c0_i32_0 : i32, i32, i32
  }
  func.func @transform_1(%arg0: i32) -> (i32, i32) {
    %c0_i32 = arith.constant 0 : i32
    %c0_i32_0 = arith.constant 0 : i32
    %c0_i32_1 = arith.constant 0 : i32
    return %c0_i32, %c0_i32_0 : i32, i32
  }
  func.func @transform_2(%arg0: i32) -> (i32, i32) {
    %c0_i32 = arith.constant 0 : i32
    %c0_i32_0 = arith.constant 0 : i32
    %c0_i32_1 = arith.constant 0 : i32
    return %c0_i32, %c0_i32_0 : i32, i32
  }
  func.func @transform_3(%arg0: i32) -> (i32, i32) {
    %c0_i32 = arith.constant 0 : i32
    %c0_i32_0 = arith.constant 0 : i32
    %c0_i32_1 = arith.constant 0 : i32
    return %c0_i32, %c0_i32_0 : i32, i32
  }
  func.func @transform_4(%arg0: i32) -> (i32, i32) {
    %c0_i32 = arith.constant 0 : i32
    %c0_i32_0 = arith.constant 0 : i32
    %c0_i32_1 = arith.constant 0 : i32
    return %c0_i32, %c0_i32_0 : i32, i32
  }
  func.func @transform_5(%arg0: i32) -> (i32, i32, i32) {
    %c0_i32 = arith.constant 0 : i32
    %c0_i32_0 = arith.constant 0 : i32
    %c0_i32_1 = arith.constant 0 : i32
    %c0_i32_2 = arith.constant 0 : i32
    return %c0_i32, %c0_i32_0, %c0_i32_1 : i32, i32, i32
  }
  func.func @transform_6(%arg0: i32) -> (i32, i32, i32) {
    %c0_i32 = arith.constant 0 : i32
    %c0_i32_0 = arith.constant 0 : i32
    %c0_i32_1 = arith.constant 0 : i32
    return %c0_i32, %arg0, %c0_i32_0 : i32, i32, i32
  }
}

module attributes {stable_mosaic.version = 11 : i64} {
  func.func @kernel(%arg0: i32, %arg1: memref<4x8x64xbf16, #tpu.memory_space<vmem>>, %arg2: memref<64x256xbf16, #tpu.memory_space<vmem>>, %arg3: memref<128x256xbf16, #tpu.memory_space<vmem>>, %arg4: memref<256x128xbf16, #tpu.memory_space<vmem>>, %arg5: memref<256x128xbf16, #tpu.memory_space<vmem>>, %arg6: memref<4x4x128xbf16, #tpu.memory_space<vmem>>, %arg7: memref<4x8x128xf32, #tpu.memory_space<vmem>>) attributes {dimension_semantics = [#tpu.dimension_semantics<parallel>], iteration_bounds = array<i64: 1>, scalar_prefetch = 0 : i64, scratch_operands = 0 : i64, tpu.core_type = #tpu.core_type<tc>, window_params = [{transform_indices = @transform_0, window_bounds = array<i64: 4, 8, 64>}, {pipeline_mode = #tpu.pipeline_mode<synchronous>, transform_indices = @transform_1, window_bounds = array<i64: 64, 256>}, {pipeline_mode = #tpu.pipeline_mode<synchronous>, transform_indices = @transform_2, window_bounds = array<i64: 128, 256>}, {pipeline_mode = #tpu.pipeline_mode<synchronous>, transform_indices = @transform_3, window_bounds = array<i64: 256, 128>}, {pipeline_mode = #tpu.pipeline_mode<synchronous>, transform_indices = @transform_4, window_bounds = array<i64: 256, 128>}, {pipeline_mode = #tpu.pipeline_mode<synchronous>, transform_indices = @transform_5, window_bounds = array<i64: 4, 4, 128>}, {transform_indices = @transform_6, window_bounds = array<i64: 4, 8, 128>}]} {
    %c0 = arith.constant 0 : index
    %c0_0 = arith.constant 0 : index
    %c0_1 = arith.constant 0 : index
    %0 = vector.load %arg1[%c0, %c0_0, %c0_1] : memref<4x8x64xbf16, #tpu.memory_space<vmem>>, vector<4x8x64xbf16>
    %1 = vector.shape_cast %0 : vector<4x8x64xbf16> to vector<32x64xbf16>
    %c0_2 = arith.constant 0 : index
    %c0_3 = arith.constant 0 : index
    %2 = vector.load %arg2[%c0_2, %c0_3] : memref<64x256xbf16, #tpu.memory_space<vmem>>, vector<64x256xbf16>
    %cst = arith.constant dense<0.000000e+00> : vector<32x256xf32>
    %3 = tpu.matmul %1, %2, %cst {dimension_numbers = #tpu.dot_dimension_numbers<[1], [0], [0], [1], [0, 0, 1, 1], [], []>} : vector<32x64xbf16>, vector<64x256xbf16>, vector<32x256xf32> -> vector<32x256xf32>
    %4 = vector.extract_strided_slice %3 {offsets = [0, 128], sizes = [32, 128], strides = [1, 1]} : vector<32x256xf32> to vector<32x128xf32>
    %5 = vector.extract_strided_slice %3 {offsets = [0, 0], sizes = [32, 128], strides = [1, 1]} : vector<32x256xf32> to vector<32x128xf32>
    %c0_4 = arith.constant 0 : index
    %c0_5 = arith.constant 0 : index
    %6 = vector.load %arg3[%c0_4, %c0_5] : memref<128x256xbf16, #tpu.memory_space<vmem>>, vector<128x256xbf16>
    %7 = arith.truncf %5 : vector<32x128xf32> to vector<32x128xbf16>
    %cst_6 = arith.constant dense<0.000000e+00> : vector<32x256xf32>
    %8 = tpu.matmul %7, %6, %cst_6 {dimension_numbers = #tpu.dot_dimension_numbers<[1], [0], [0], [1], [0, 0, 1, 1], [], []>} : vector<32x128xbf16>, vector<128x256xbf16>, vector<32x256xf32> -> vector<32x256xf32>
    %9 = vector.extract_strided_slice %8 {offsets = [0, 128], sizes = [32, 128], strides = [1, 1]} : vector<32x256xf32> to vector<32x128xf32>
    %10 = vector.extract_strided_slice %8 {offsets = [0, 0], sizes = [32, 128], strides = [1, 1]} : vector<32x256xf32> to vector<32x128xf32>
    %c0_7 = arith.constant 0 : index
    %c0_8 = arith.constant 0 : index
    %c0_9 = arith.constant 0 : index
    %11 = vector.load %arg6[%c0_7, %c0_8, %c0_9] : memref<4x4x128xbf16, #tpu.memory_space<vmem>>, vector<1x1x128xbf16>
    %12 = vector.shape_cast %11 : vector<1x1x128xbf16> to vector<1x128xbf16>
    %13 = vector.extract_strided_slice %10 {offsets = [0, 0], sizes = [8, 128], strides = [1, 1]} : vector<32x128xf32> to vector<8x128xf32>
    %14 = arith.extf %12 : vector<1x128xbf16> to vector<1x128xf32>
    %15 = vector.broadcast %14 : vector<1x128xf32> to vector<8x128xf32>
    %16 = arith.mulf %13, %15 : vector<8x128xf32>
    %c1 = arith.constant 1 : index
    %c0_10 = arith.constant 0 : index
    %c0_11 = arith.constant 0 : index
    %17 = vector.load %arg6[%c1, %c0_10, %c0_11] : memref<4x4x128xbf16, #tpu.memory_space<vmem>>, vector<1x1x128xbf16>
    %18 = vector.shape_cast %17 : vector<1x1x128xbf16> to vector<1x128xbf16>
    %19 = vector.extract_strided_slice %10 {offsets = [8, 0], sizes = [8, 128], strides = [1, 1]} : vector<32x128xf32> to vector<8x128xf32>
    %20 = arith.extf %18 : vector<1x128xbf16> to vector<1x128xf32>
    %21 = vector.broadcast %20 : vector<1x128xf32> to vector<8x128xf32>
    %22 = arith.mulf %19, %21 : vector<8x128xf32>
    %c2 = arith.constant 2 : index
    %c0_12 = arith.constant 0 : index
    %c0_13 = arith.constant 0 : index
    %23 = vector.load %arg6[%c2, %c0_12, %c0_13] : memref<4x4x128xbf16, #tpu.memory_space<vmem>>, vector<1x1x128xbf16>
    %24 = vector.shape_cast %23 : vector<1x1x128xbf16> to vector<1x128xbf16>
    %25 = vector.extract_strided_slice %10 {offsets = [16, 0], sizes = [8, 128], strides = [1, 1]} : vector<32x128xf32> to vector<8x128xf32>
    %26 = arith.extf %24 : vector<1x128xbf16> to vector<1x128xf32>
    %27 = vector.broadcast %26 : vector<1x128xf32> to vector<8x128xf32>
    %28 = arith.mulf %25, %27 : vector<8x128xf32>
    %29 = arith.addf %16, %28 : vector<8x128xf32>
    %c3 = arith.constant 3 : index
    %c0_14 = arith.constant 0 : index
    %c0_15 = arith.constant 0 : index
    %30 = vector.load %arg6[%c3, %c0_14, %c0_15] : memref<4x4x128xbf16, #tpu.memory_space<vmem>>, vector<1x1x128xbf16>
    %31 = vector.shape_cast %30 : vector<1x1x128xbf16> to vector<1x128xbf16>
    %32 = vector.extract_strided_slice %10 {offsets = [24, 0], sizes = [8, 128], strides = [1, 1]} : vector<32x128xf32> to vector<8x128xf32>
    %33 = arith.extf %31 : vector<1x128xbf16> to vector<1x128xf32>
    %34 = vector.broadcast %33 : vector<1x128xf32> to vector<8x128xf32>
    %35 = arith.mulf %32, %34 : vector<8x128xf32>
    %36 = arith.addf %22, %35 : vector<8x128xf32>
    %37 = arith.addf %29, %36 : vector<8x128xf32>
    %c0_16 = arith.constant 0 : index
    %c1_17 = arith.constant 1 : index
    %c0_18 = arith.constant 0 : index
    %38 = vector.load %arg6[%c0_16, %c1_17, %c0_18] : memref<4x4x128xbf16, #tpu.memory_space<vmem>>, vector<1x1x128xbf16>
    %39 = vector.shape_cast %38 : vector<1x1x128xbf16> to vector<1x128xbf16>
    %40 = vector.extract_strided_slice %10 {offsets = [0, 0], sizes = [8, 128], strides = [1, 1]} : vector<32x128xf32> to vector<8x128xf32>
    %41 = arith.extf %39 : vector<1x128xbf16> to vector<1x128xf32>
    %42 = vector.broadcast %41 : vector<1x128xf32> to vector<8x128xf32>
    %43 = arith.mulf %40, %42 : vector<8x128xf32>
    %c1_19 = arith.constant 1 : index
    %c1_20 = arith.constant 1 : index
    %c0_21 = arith.constant 0 : index
    %44 = vector.load %arg6[%c1_19, %c1_20, %c0_21] : memref<4x4x128xbf16, #tpu.memory_space<vmem>>, vector<1x1x128xbf16>
    %45 = vector.shape_cast %44 : vector<1x1x128xbf16> to vector<1x128xbf16>
    %46 = vector.extract_strided_slice %10 {offsets = [8, 0], sizes = [8, 128], strides = [1, 1]} : vector<32x128xf32> to vector<8x128xf32>
    %47 = arith.extf %45 : vector<1x128xbf16> to vector<1x128xf32>
    %48 = vector.broadcast %47 : vector<1x128xf32> to vector<8x128xf32>
    %49 = arith.mulf %46, %48 : vector<8x128xf32>
    %c2_22 = arith.constant 2 : index
    %c1_23 = arith.constant 1 : index
    %c0_24 = arith.constant 0 : index
    %50 = vector.load %arg6[%c2_22, %c1_23, %c0_24] : memref<4x4x128xbf16, #tpu.memory_space<vmem>>, vector<1x1x128xbf16>
    %51 = vector.shape_cast %50 : vector<1x1x128xbf16> to vector<1x128xbf16>
    %52 = vector.extract_strided_slice %10 {offsets = [16, 0], sizes = [8, 128], strides = [1, 1]} : vector<32x128xf32> to vector<8x128xf32>
    %53 = arith.extf %51 : vector<1x128xbf16> to vector<1x128xf32>
    %54 = vector.broadcast %53 : vector<1x128xf32> to vector<8x128xf32>
    %55 = arith.mulf %52, %54 : vector<8x128xf32>
    %56 = arith.addf %43, %55 : vector<8x128xf32>
    %c3_25 = arith.constant 3 : index
    %c1_26 = arith.constant 1 : index
    %c0_27 = arith.constant 0 : index
    %57 = vector.load %arg6[%c3_25, %c1_26, %c0_27] : memref<4x4x128xbf16, #tpu.memory_space<vmem>>, vector<1x1x128xbf16>
    %58 = vector.shape_cast %57 : vector<1x1x128xbf16> to vector<1x128xbf16>
    %59 = vector.extract_strided_slice %10 {offsets = [24, 0], sizes = [8, 128], strides = [1, 1]} : vector<32x128xf32> to vector<8x128xf32>
    %60 = arith.extf %58 : vector<1x128xbf16> to vector<1x128xf32>
    %61 = vector.broadcast %60 : vector<1x128xf32> to vector<8x128xf32>
    %62 = arith.mulf %59, %61 : vector<8x128xf32>
    %63 = arith.addf %49, %62 : vector<8x128xf32>
    %64 = arith.addf %56, %63 : vector<8x128xf32>
    %c0_28 = arith.constant 0 : index
    %c2_29 = arith.constant 2 : index
    %c0_30 = arith.constant 0 : index
    %65 = vector.load %arg6[%c0_28, %c2_29, %c0_30] : memref<4x4x128xbf16, #tpu.memory_space<vmem>>, vector<1x1x128xbf16>
    %66 = vector.shape_cast %65 : vector<1x1x128xbf16> to vector<1x128xbf16>
    %67 = vector.extract_strided_slice %10 {offsets = [0, 0], sizes = [8, 128], strides = [1, 1]} : vector<32x128xf32> to vector<8x128xf32>
    %68 = arith.extf %66 : vector<1x128xbf16> to vector<1x128xf32>
    %69 = vector.broadcast %68 : vector<1x128xf32> to vector<8x128xf32>
    %70 = arith.mulf %67, %69 : vector<8x128xf32>
    %c1_31 = arith.constant 1 : index
    %c2_32 = arith.constant 2 : index
    %c0_33 = arith.constant 0 : index
    %71 = vector.load %arg6[%c1_31, %c2_32, %c0_33] : memref<4x4x128xbf16, #tpu.memory_space<vmem>>, vector<1x1x128xbf16>
    %72 = vector.shape_cast %71 : vector<1x1x128xbf16> to vector<1x128xbf16>
    %73 = vector.extract_strided_slice %10 {offsets = [8, 0], sizes = [8, 128], strides = [1, 1]} : vector<32x128xf32> to vector<8x128xf32>
    %74 = arith.extf %72 : vector<1x128xbf16> to vector<1x128xf32>
    %75 = vector.broadcast %74 : vector<1x128xf32> to vector<8x128xf32>
    %76 = arith.mulf %73, %75 : vector<8x128xf32>
    %c2_34 = arith.constant 2 : index
    %c2_35 = arith.constant 2 : index
    %c0_36 = arith.constant 0 : index
    %77 = vector.load %arg6[%c2_34, %c2_35, %c0_36] : memref<4x4x128xbf16, #tpu.memory_space<vmem>>, vector<1x1x128xbf16>
    %78 = vector.shape_cast %77 : vector<1x1x128xbf16> to vector<1x128xbf16>
    %79 = vector.extract_strided_slice %10 {offsets = [16, 0], sizes = [8, 128], strides = [1, 1]} : vector<32x128xf32> to vector<8x128xf32>
    %80 = arith.extf %78 : vector<1x128xbf16> to vector<1x128xf32>
    %81 = vector.broadcast %80 : vector<1x128xf32> to vector<8x128xf32>
    %82 = arith.mulf %79, %81 : vector<8x128xf32>
    %83 = arith.addf %70, %82 : vector<8x128xf32>
    %c3_37 = arith.constant 3 : index
    %c2_38 = arith.constant 2 : index
    %c0_39 = arith.constant 0 : index
    %84 = vector.load %arg6[%c3_37, %c2_38, %c0_39] : memref<4x4x128xbf16, #tpu.memory_space<vmem>>, vector<1x1x128xbf16>
    %85 = vector.shape_cast %84 : vector<1x1x128xbf16> to vector<1x128xbf16>
    %86 = vector.extract_strided_slice %10 {offsets = [24, 0], sizes = [8, 128], strides = [1, 1]} : vector<32x128xf32> to vector<8x128xf32>
    %87 = arith.extf %85 : vector<1x128xbf16> to vector<1x128xf32>
    %88 = vector.broadcast %87 : vector<1x128xf32> to vector<8x128xf32>
    %89 = arith.mulf %86, %88 : vector<8x128xf32>
    %90 = arith.addf %76, %89 : vector<8x128xf32>
    %91 = arith.addf %83, %90 : vector<8x128xf32>
    %c0_40 = arith.constant 0 : index
    %c3_41 = arith.constant 3 : index
    %c0_42 = arith.constant 0 : index
    %92 = vector.load %arg6[%c0_40, %c3_41, %c0_42] : memref<4x4x128xbf16, #tpu.memory_space<vmem>>, vector<1x1x128xbf16>
    %93 = vector.shape_cast %92 : vector<1x1x128xbf16> to vector<1x128xbf16>
    %94 = vector.extract_strided_slice %10 {offsets = [0, 0], sizes = [8, 128], strides = [1, 1]} : vector<32x128xf32> to vector<8x128xf32>
    %95 = arith.extf %93 : vector<1x128xbf16> to vector<1x128xf32>
    %96 = vector.broadcast %95 : vector<1x128xf32> to vector<8x128xf32>
    %97 = arith.mulf %94, %96 : vector<8x128xf32>
    %c1_43 = arith.constant 1 : index
    %c3_44 = arith.constant 3 : index
    %c0_45 = arith.constant 0 : index
    %98 = vector.load %arg6[%c1_43, %c3_44, %c0_45] : memref<4x4x128xbf16, #tpu.memory_space<vmem>>, vector<1x1x128xbf16>
    %99 = vector.shape_cast %98 : vector<1x1x128xbf16> to vector<1x128xbf16>
    %100 = vector.extract_strided_slice %10 {offsets = [8, 0], sizes = [8, 128], strides = [1, 1]} : vector<32x128xf32> to vector<8x128xf32>
    %101 = arith.extf %99 : vector<1x128xbf16> to vector<1x128xf32>
    %102 = vector.broadcast %101 : vector<1x128xf32> to vector<8x128xf32>
    %103 = arith.mulf %100, %102 : vector<8x128xf32>
    %c2_46 = arith.constant 2 : index
    %c3_47 = arith.constant 3 : index
    %c0_48 = arith.constant 0 : index
    %104 = vector.load %arg6[%c2_46, %c3_47, %c0_48] : memref<4x4x128xbf16, #tpu.memory_space<vmem>>, vector<1x1x128xbf16>
    %105 = vector.shape_cast %104 : vector<1x1x128xbf16> to vector<1x128xbf16>
    %106 = vector.extract_strided_slice %10 {offsets = [16, 0], sizes = [8, 128], strides = [1, 1]} : vector<32x128xf32> to vector<8x128xf32>
    %107 = arith.extf %105 : vector<1x128xbf16> to vector<1x128xf32>
    %108 = vector.broadcast %107 : vector<1x128xf32> to vector<8x128xf32>
    %109 = arith.mulf %106, %108 : vector<8x128xf32>
    %110 = arith.addf %97, %109 : vector<8x128xf32>
    %c3_49 = arith.constant 3 : index
    %c3_50 = arith.constant 3 : index
    %c0_51 = arith.constant 0 : index
    %111 = vector.load %arg6[%c3_49, %c3_50, %c0_51] : memref<4x4x128xbf16, #tpu.memory_space<vmem>>, vector<1x1x128xbf16>
    %112 = vector.shape_cast %111 : vector<1x1x128xbf16> to vector<1x128xbf16>
    %113 = vector.extract_strided_slice %10 {offsets = [24, 0], sizes = [8, 128], strides = [1, 1]} : vector<32x128xf32> to vector<8x128xf32>
    %114 = arith.extf %112 : vector<1x128xbf16> to vector<1x128xf32>
    %115 = vector.broadcast %114 : vector<1x128xf32> to vector<8x128xf32>
    %116 = arith.mulf %113, %115 : vector<8x128xf32>
    %117 = arith.addf %103, %116 : vector<8x128xf32>
    %118 = arith.addf %110, %117 : vector<8x128xf32>
    %119 = tpu.concatenate %37, %64, %91, %118 in 0 : vector<8x128xf32>, vector<8x128xf32>, vector<8x128xf32>, vector<8x128xf32> -> vector<32x128xf32>
    %c0_52 = arith.constant 0 : index
    %c0_53 = arith.constant 0 : index
    %c0_54 = arith.constant 0 : index
    %120 = vector.load %arg6[%c0_52, %c0_53, %c0_54] : memref<4x4x128xbf16, #tpu.memory_space<vmem>>, vector<1x1x128xbf16>
    %121 = vector.shape_cast %120 : vector<1x1x128xbf16> to vector<1x128xbf16>
    %122 = vector.extract_strided_slice %9 {offsets = [0, 0], sizes = [8, 128], strides = [1, 1]} : vector<32x128xf32> to vector<8x128xf32>
    %123 = arith.extf %121 : vector<1x128xbf16> to vector<1x128xf32>
    %124 = vector.broadcast %123 : vector<1x128xf32> to vector<8x128xf32>
    %125 = arith.mulf %122, %124 : vector<8x128xf32>
    %c1_55 = arith.constant 1 : index
    %c0_56 = arith.constant 0 : index
    %c0_57 = arith.constant 0 : index
    %126 = vector.load %arg6[%c1_55, %c0_56, %c0_57] : memref<4x4x128xbf16, #tpu.memory_space<vmem>>, vector<1x1x128xbf16>
    %127 = vector.shape_cast %126 : vector<1x1x128xbf16> to vector<1x128xbf16>
    %128 = vector.extract_strided_slice %9 {offsets = [8, 0], sizes = [8, 128], strides = [1, 1]} : vector<32x128xf32> to vector<8x128xf32>
    %129 = arith.extf %127 : vector<1x128xbf16> to vector<1x128xf32>
    %130 = vector.broadcast %129 : vector<1x128xf32> to vector<8x128xf32>
    %131 = arith.mulf %128, %130 : vector<8x128xf32>
    %c2_58 = arith.constant 2 : index
    %c0_59 = arith.constant 0 : index
    %c0_60 = arith.constant 0 : index
    %132 = vector.load %arg6[%c2_58, %c0_59, %c0_60] : memref<4x4x128xbf16, #tpu.memory_space<vmem>>, vector<1x1x128xbf16>
    %133 = vector.shape_cast %132 : vector<1x1x128xbf16> to vector<1x128xbf16>
    %134 = vector.extract_strided_slice %9 {offsets = [16, 0], sizes = [8, 128], strides = [1, 1]} : vector<32x128xf32> to vector<8x128xf32>
    %135 = arith.extf %133 : vector<1x128xbf16> to vector<1x128xf32>
    %136 = vector.broadcast %135 : vector<1x128xf32> to vector<8x128xf32>
    %137 = arith.mulf %134, %136 : vector<8x128xf32>
    %138 = arith.addf %125, %137 : vector<8x128xf32>
    %c3_61 = arith.constant 3 : index
    %c0_62 = arith.constant 0 : index
    %c0_63 = arith.constant 0 : index
    %139 = vector.load %arg6[%c3_61, %c0_62, %c0_63] : memref<4x4x128xbf16, #tpu.memory_space<vmem>>, vector<1x1x128xbf16>
    %140 = vector.shape_cast %139 : vector<1x1x128xbf16> to vector<1x128xbf16>
    %141 = vector.extract_strided_slice %9 {offsets = [24, 0], sizes = [8, 128], strides = [1, 1]} : vector<32x128xf32> to vector<8x128xf32>
    %142 = arith.extf %140 : vector<1x128xbf16> to vector<1x128xf32>
    %143 = vector.broadcast %142 : vector<1x128xf32> to vector<8x128xf32>
    %144 = arith.mulf %141, %143 : vector<8x128xf32>
    %145 = arith.addf %131, %144 : vector<8x128xf32>
    %146 = arith.addf %138, %145 : vector<8x128xf32>
    %c0_64 = arith.constant 0 : index
    %c1_65 = arith.constant 1 : index
    %c0_66 = arith.constant 0 : index
    %147 = vector.load %arg6[%c0_64, %c1_65, %c0_66] : memref<4x4x128xbf16, #tpu.memory_space<vmem>>, vector<1x1x128xbf16>
    %148 = vector.shape_cast %147 : vector<1x1x128xbf16> to vector<1x128xbf16>
    %149 = vector.extract_strided_slice %9 {offsets = [0, 0], sizes = [8, 128], strides = [1, 1]} : vector<32x128xf32> to vector<8x128xf32>
    %150 = arith.extf %148 : vector<1x128xbf16> to vector<1x128xf32>
    %151 = vector.broadcast %150 : vector<1x128xf32> to vector<8x128xf32>
    %152 = arith.mulf %149, %151 : vector<8x128xf32>
    %c1_67 = arith.constant 1 : index
    %c1_68 = arith.constant 1 : index
    %c0_69 = arith.constant 0 : index
    %153 = vector.load %arg6[%c1_67, %c1_68, %c0_69] : memref<4x4x128xbf16, #tpu.memory_space<vmem>>, vector<1x1x128xbf16>
    %154 = vector.shape_cast %153 : vector<1x1x128xbf16> to vector<1x128xbf16>
    %155 = vector.extract_strided_slice %9 {offsets = [8, 0], sizes = [8, 128], strides = [1, 1]} : vector<32x128xf32> to vector<8x128xf32>
    %156 = arith.extf %154 : vector<1x128xbf16> to vector<1x128xf32>
    %157 = vector.broadcast %156 : vector<1x128xf32> to vector<8x128xf32>
    %158 = arith.mulf %155, %157 : vector<8x128xf32>
    %c2_70 = arith.constant 2 : index
    %c1_71 = arith.constant 1 : index
    %c0_72 = arith.constant 0 : index
    %159 = vector.load %arg6[%c2_70, %c1_71, %c0_72] : memref<4x4x128xbf16, #tpu.memory_space<vmem>>, vector<1x1x128xbf16>
    %160 = vector.shape_cast %159 : vector<1x1x128xbf16> to vector<1x128xbf16>
    %161 = vector.extract_strided_slice %9 {offsets = [16, 0], sizes = [8, 128], strides = [1, 1]} : vector<32x128xf32> to vector<8x128xf32>
    %162 = arith.extf %160 : vector<1x128xbf16> to vector<1x128xf32>
    %163 = vector.broadcast %162 : vector<1x128xf32> to vector<8x128xf32>
    %164 = arith.mulf %161, %163 : vector<8x128xf32>
    %165 = arith.addf %152, %164 : vector<8x128xf32>
    %c3_73 = arith.constant 3 : index
    %c1_74 = arith.constant 1 : index
    %c0_75 = arith.constant 0 : index
    %166 = vector.load %arg6[%c3_73, %c1_74, %c0_75] : memref<4x4x128xbf16, #tpu.memory_space<vmem>>, vector<1x1x128xbf16>
    %167 = vector.shape_cast %166 : vector<1x1x128xbf16> to vector<1x128xbf16>
    %168 = vector.extract_strided_slice %9 {offsets = [24, 0], sizes = [8, 128], strides = [1, 1]} : vector<32x128xf32> to vector<8x128xf32>
    %169 = arith.extf %167 : vector<1x128xbf16> to vector<1x128xf32>
    %170 = vector.broadcast %169 : vector<1x128xf32> to vector<8x128xf32>
    %171 = arith.mulf %168, %170 : vector<8x128xf32>
    %172 = arith.addf %158, %171 : vector<8x128xf32>
    %173 = arith.addf %165, %172 : vector<8x128xf32>
    %c0_76 = arith.constant 0 : index
    %c2_77 = arith.constant 2 : index
    %c0_78 = arith.constant 0 : index
    %174 = vector.load %arg6[%c0_76, %c2_77, %c0_78] : memref<4x4x128xbf16, #tpu.memory_space<vmem>>, vector<1x1x128xbf16>
    %175 = vector.shape_cast %174 : vector<1x1x128xbf16> to vector<1x128xbf16>
    %176 = vector.extract_strided_slice %9 {offsets = [0, 0], sizes = [8, 128], strides = [1, 1]} : vector<32x128xf32> to vector<8x128xf32>
    %177 = arith.extf %175 : vector<1x128xbf16> to vector<1x128xf32>
    %178 = vector.broadcast %177 : vector<1x128xf32> to vector<8x128xf32>
    %179 = arith.mulf %176, %178 : vector<8x128xf32>
    %c1_79 = arith.constant 1 : index
    %c2_80 = arith.constant 2 : index
    %c0_81 = arith.constant 0 : index
    %180 = vector.load %arg6[%c1_79, %c2_80, %c0_81] : memref<4x4x128xbf16, #tpu.memory_space<vmem>>, vector<1x1x128xbf16>
    %181 = vector.shape_cast %180 : vector<1x1x128xbf16> to vector<1x128xbf16>
    %182 = vector.extract_strided_slice %9 {offsets = [8, 0], sizes = [8, 128], strides = [1, 1]} : vector<32x128xf32> to vector<8x128xf32>
    %183 = arith.extf %181 : vector<1x128xbf16> to vector<1x128xf32>
    %184 = vector.broadcast %183 : vector<1x128xf32> to vector<8x128xf32>
    %185 = arith.mulf %182, %184 : vector<8x128xf32>
    %c2_82 = arith.constant 2 : index
    %c2_83 = arith.constant 2 : index
    %c0_84 = arith.constant 0 : index
    %186 = vector.load %arg6[%c2_82, %c2_83, %c0_84] : memref<4x4x128xbf16, #tpu.memory_space<vmem>>, vector<1x1x128xbf16>
    %187 = vector.shape_cast %186 : vector<1x1x128xbf16> to vector<1x128xbf16>
    %188 = vector.extract_strided_slice %9 {offsets = [16, 0], sizes = [8, 128], strides = [1, 1]} : vector<32x128xf32> to vector<8x128xf32>
    %189 = arith.extf %187 : vector<1x128xbf16> to vector<1x128xf32>
    %190 = vector.broadcast %189 : vector<1x128xf32> to vector<8x128xf32>
    %191 = arith.mulf %188, %190 : vector<8x128xf32>
    %192 = arith.addf %179, %191 : vector<8x128xf32>
    %c3_85 = arith.constant 3 : index
    %c2_86 = arith.constant 2 : index
    %c0_87 = arith.constant 0 : index
    %193 = vector.load %arg6[%c3_85, %c2_86, %c0_87] : memref<4x4x128xbf16, #tpu.memory_space<vmem>>, vector<1x1x128xbf16>
    %194 = vector.shape_cast %193 : vector<1x1x128xbf16> to vector<1x128xbf16>
    %195 = vector.extract_strided_slice %9 {offsets = [24, 0], sizes = [8, 128], strides = [1, 1]} : vector<32x128xf32> to vector<8x128xf32>
    %196 = arith.extf %194 : vector<1x128xbf16> to vector<1x128xf32>
    %197 = vector.broadcast %196 : vector<1x128xf32> to vector<8x128xf32>
    %198 = arith.mulf %195, %197 : vector<8x128xf32>
    %199 = arith.addf %185, %198 : vector<8x128xf32>
    %200 = arith.addf %192, %199 : vector<8x128xf32>
    %c0_88 = arith.constant 0 : index
    %c3_89 = arith.constant 3 : index
    %c0_90 = arith.constant 0 : index
    %201 = vector.load %arg6[%c0_88, %c3_89, %c0_90] : memref<4x4x128xbf16, #tpu.memory_space<vmem>>, vector<1x1x128xbf16>
    %202 = vector.shape_cast %201 : vector<1x1x128xbf16> to vector<1x128xbf16>
    %203 = vector.extract_strided_slice %9 {offsets = [0, 0], sizes = [8, 128], strides = [1, 1]} : vector<32x128xf32> to vector<8x128xf32>
    %204 = arith.extf %202 : vector<1x128xbf16> to vector<1x128xf32>
    %205 = vector.broadcast %204 : vector<1x128xf32> to vector<8x128xf32>
    %206 = arith.mulf %203, %205 : vector<8x128xf32>
    %c1_91 = arith.constant 1 : index
    %c3_92 = arith.constant 3 : index
    %c0_93 = arith.constant 0 : index
    %207 = vector.load %arg6[%c1_91, %c3_92, %c0_93] : memref<4x4x128xbf16, #tpu.memory_space<vmem>>, vector<1x1x128xbf16>
    %208 = vector.shape_cast %207 : vector<1x1x128xbf16> to vector<1x128xbf16>
    %209 = vector.extract_strided_slice %9 {offsets = [8, 0], sizes = [8, 128], strides = [1, 1]} : vector<32x128xf32> to vector<8x128xf32>
    %210 = arith.extf %208 : vector<1x128xbf16> to vector<1x128xf32>
    %211 = vector.broadcast %210 : vector<1x128xf32> to vector<8x128xf32>
    %212 = arith.mulf %209, %211 : vector<8x128xf32>
    %c2_94 = arith.constant 2 : index
    %c3_95 = arith.constant 3 : index
    %c0_96 = arith.constant 0 : index
    %213 = vector.load %arg6[%c2_94, %c3_95, %c0_96] : memref<4x4x128xbf16, #tpu.memory_space<vmem>>, vector<1x1x128xbf16>
    %214 = vector.shape_cast %213 : vector<1x1x128xbf16> to vector<1x128xbf16>
    %215 = vector.extract_strided_slice %9 {offsets = [16, 0], sizes = [8, 128], strides = [1, 1]} : vector<32x128xf32> to vector<8x128xf32>
    %216 = arith.extf %214 : vector<1x128xbf16> to vector<1x128xf32>
    %217 = vector.broadcast %216 : vector<1x128xf32> to vector<8x128xf32>
    %218 = arith.mulf %215, %217 : vector<8x128xf32>
    %219 = arith.addf %206, %218 : vector<8x128xf32>
    %c3_97 = arith.constant 3 : index
    %c3_98 = arith.constant 3 : index
    %c0_99 = arith.constant 0 : index
    %220 = vector.load %arg6[%c3_97, %c3_98, %c0_99] : memref<4x4x128xbf16, #tpu.memory_space<vmem>>, vector<1x1x128xbf16>
    %221 = vector.shape_cast %220 : vector<1x1x128xbf16> to vector<1x128xbf16>
    %222 = vector.extract_strided_slice %9 {offsets = [24, 0], sizes = [8, 128], strides = [1, 1]} : vector<32x128xf32> to vector<8x128xf32>
    %223 = arith.extf %221 : vector<1x128xbf16> to vector<1x128xf32>
    %224 = vector.broadcast %223 : vector<1x128xf32> to vector<8x128xf32>
    %225 = arith.mulf %222, %224 : vector<8x128xf32>
    %226 = arith.addf %212, %225 : vector<8x128xf32>
    %227 = arith.addf %219, %226 : vector<8x128xf32>
    %228 = tpu.concatenate %146, %173, %200, %227 in 0 : vector<8x128xf32>, vector<8x128xf32>, vector<8x128xf32>, vector<8x128xf32> -> vector<32x128xf32>
    %c0_100 = arith.constant 0 : index
    %c0_101 = arith.constant 0 : index
    %229 = vector.load %arg4[%c0_100, %c0_101] : memref<256x128xbf16, #tpu.memory_space<vmem>>, vector<256x128xbf16>
    %230 = arith.truncf %119 : vector<32x128xf32> to vector<32x128xbf16>
    %231 = arith.truncf %228 : vector<32x128xf32> to vector<32x128xbf16>
    %232 = tpu.concatenate %230, %231 in 1 : vector<32x128xbf16>, vector<32x128xbf16> -> vector<32x256xbf16>
    %cst_102 = arith.constant dense<0.000000e+00> : vector<32x128xf32>
    %233 = tpu.matmul %232, %229, %cst_102 {dimension_numbers = #tpu.dot_dimension_numbers<[1], [0], [0], [1], [0, 0, 1, 1], [], []>} : vector<32x256xbf16>, vector<256x128xbf16>, vector<32x128xf32> -> vector<32x128xf32>
    %c0_103 = arith.constant 0 : index
    %c0_104 = arith.constant 0 : index
    %234 = vector.load %arg5[%c0_103, %c0_104] : memref<256x128xbf16, #tpu.memory_space<vmem>>, vector<256x128xbf16>
    %235 = arith.truncf %233 : vector<32x128xf32> to vector<32x128xbf16>
    %236 = arith.truncf %4 : vector<32x128xf32> to vector<32x128xbf16>
    %237 = tpu.concatenate %235, %236 in 1 : vector<32x128xbf16>, vector<32x128xbf16> -> vector<32x256xbf16>
    %cst_105 = arith.constant dense<0.000000e+00> : vector<32x128xf32>
    %238 = tpu.matmul %237, %234, %cst_105 {dimension_numbers = #tpu.dot_dimension_numbers<[1], [0], [0], [1], [0, 0, 1, 1], [], []>} : vector<32x256xbf16>, vector<256x128xbf16>, vector<32x128xf32> -> vector<32x128xf32>
    %239 = vector.shape_cast %238 : vector<32x128xf32> to vector<4x8x128xf32>
    %c0_106 = arith.constant 0 : index
    %c0_107 = arith.constant 0 : index
    %c0_108 = arith.constant 0 : index
    %240 = vector.load %arg7[%c0_106, %c0_107, %c0_108] : memref<4x8x128xf32, #tpu.memory_space<vmem>>, vector<4x8x128xf32>
    tpu.vector_store %arg7[%c0_106, %c0_107, %c0_108], %239 {strides = array<i32>} : memref<4x8x128xf32, #tpu.memory_space<vmem>>, vector<4x8x128xf32>,
    return
  }
  func.func @transform_0(%arg0: i32) -> (i32, i32, i32) {
    %c0_i32 = arith.constant 0 : i32
    %c0_i32_0 = arith.constant 0 : i32
    %c0_i32_1 = arith.constant 0 : i32
    return %c0_i32, %arg0, %c0_i32_0 : i32, i32, i32
  }
  func.func @transform_1(%arg0: i32) -> (i32, i32) {
    %c0_i32 = arith.constant 0 : i32
    %c0_i32_0 = arith.constant 0 : i32
    %c0_i32_1 = arith.constant 0 : i32
    return %c0_i32, %c0_i32_0 : i32, i32
  }
  func.func @transform_2(%arg0: i32) -> (i32, i32) {
    %c0_i32 = arith.constant 0 : i32
    %c0_i32_0 = arith.constant 0 : i32
    %c0_i32_1 = arith.constant 0 : i32
    return %c0_i32, %c0_i32_0 : i32, i32
  }
  func.func @transform_3(%arg0: i32) -> (i32, i32) {
    %c0_i32 = arith.constant 0 : i32
    %c0_i32_0 = arith.constant 0 : i32
    %c0_i32_1 = arith.constant 0 : i32
    return %c0_i32, %c0_i32_0 : i32, i32
  }
  func.func @transform_4(%arg0: i32) -> (i32, i32) {
    %c0_i32 = arith.constant 0 : i32
    %c0_i32_0 = arith.constant 0 : i32
    %c0_i32_1 = arith.constant 0 : i32
    return %c0_i32, %c0_i32_0 : i32, i32
  }
  func.func @transform_5(%arg0: i32) -> (i32, i32, i32) {
    %c0_i32 = arith.constant 0 : i32
    %c0_i32_0 = arith.constant 0 : i32
    %c0_i32_1 = arith.constant 0 : i32
    %c0_i32_2 = arith.constant 0 : i32
    return %c0_i32, %c0_i32_0, %c0_i32_1 : i32, i32, i32
  }
  func.func @transform_6(%arg0: i32) -> (i32, i32, i32) {
    %c0_i32 = arith.constant 0 : i32
    %c0_i32_0 = arith.constant 0 : i32
    %c0_i32_1 = arith.constant 0 : i32
    return %c0_i32, %arg0, %c0_i32_0 : i32, i32, i32
  }
}

</mosaic_0001>

<llo_original>
// kernel: tpu_custom_call.1
$region0: #{tpu_custom_call.1}
  #allocation0 [shape = 'u32[]', space=smem, size = 0x4, offset = 0x4, fixed_abs, tag = 'smem constant byte address 0x4 - core index']
  #allocation1 [shape = 'u32[144,128]{1,0:T(1,128)}', space=vmem, size = 0x12000, scoped, tag = 'internal scratch']
  %s0 = inlined_call_operand.hbm [shape: bf16[4,8,64], index: 0, kind: input, shape index: {}]
  %s1 = inlined_call_operand.hbm [shape: bf16[64,256], index: 1, kind: input, shape index: {}]
  %s2 = inlined_call_operand.hbm [shape: bf16[128,256], index: 2, kind: input, shape index: {}]
  %s3 = inlined_call_operand.hbm [shape: bf16[256,128], index: 3, kind: input, shape index: {}]
  %s4 = inlined_call_operand.hbm [shape: bf16[256,128], index: 4, kind: input, shape index: {}]
  %s5 = inlined_call_operand.vmem [shape: bf16[4,4,128], index: 5, kind: input, shape index: {}]
  %s6 = inlined_call_operand.hbm [shape: f32[4,8,128], index: 6, kind: output, shape index: {}]
  %s7 = sld [smem:[#allocation0]]
  $region54: #{tpu_custom_call.1} parent=0
    _
  %s9 = ssub.s32 1, %s7
  %s10 = scalar_select 0, %s9, %s7
  $region1: #{tpu_custom_call.1} parent=0
    #allocation2 [shape = 'u8[8192]{0}', space=vmem, size = 0x2000, scoped, tag = 'input window, operand 0, single buffered']
    #allocation3 [shape = 's32[1]{0}', space=sflag, size = 0x4, scoped, tag = 'scoped memory for tpu_custom_call.1']
    #allocation4 [shape = 's32[1]{0}', space=sflag, size = 0x4, scoped, tag = 'scoped memory for tpu_custom_call.1']
    #allocation5 [shape = 'u8[32768]{0}', space=vmem, size = 0x8000, scoped, tag = 'input window, operand 1, single buffered']
    #allocation6 [shape = 's32[1]{0}', space=sflag, size = 0x4, scoped, tag = 'scoped memory for tpu_custom_call.1']
    #allocation7 [shape = 'u8[65536]{0}', space=vmem, size = 0x10000, scoped, tag = 'input window, operand 2, single buffered']
    #allocation8 [shape = 'u8[65536]{0}', space=vmem, size = 0x10000, scoped, tag = 'input window, operand 3, single buffered']
    #allocation9 [shape = 's32[1]{0}', space=sflag, size = 0x4, scoped, tag = 'scoped memory for tpu_custom_call.1']
    #allocation10 [shape = 'u8[65536]{0}', space=vmem, size = 0x10000, scoped, tag = 'input window, operand 4, single buffered']
    #allocation11 [shape = 'u8[16384]{0}', space=vmem, size = 0x4000, scoped, tag = 'output window, operand 0, single buffered']
    %11 = vsyncpa [#allocation3], 0
    %12 = vsyncpa [#allocation6], 0
    %13 = vsyncpa [#allocation9], 0
    %14 = vsyncpa [#allocation4], 0
    // Predicated region
    $region2: #{tpu_custom_call.1} parent=1 // pred_check
      _
    $region3: #{tpu_custom_call.1} parent=1 // pred_check_branch
      %16 = sbr.rel (0) target = $region5
    $region4: #{tpu_custom_call.1} parent=1 // pred_region
      %s18 = ssub.s32 256, 256
      %19 = vsyncadd [#allocation3], %s18
      %s20 = sshll.u32 [#allocation2], 4
      %s21 = int_to_ptr.vmem [resolvable:$true] %s20
      %26 = dma.hbm_to_vmem [thread:$0]  %s0, 256, %s21, [#allocation3], 64, 64, 4
    $region5: #{tpu_custom_call.1} parent=1 // pred_fallthru
      _
    // Predicated region
    $region6: #{tpu_custom_call.1} parent=1 // pred_check
      _
    $region7: #{tpu_custom_call.1} parent=1 // pred_check_branch
      %28 = sbr.rel (0) target = $region9
    $region8: #{tpu_custom_call.1} parent=1 // pred_region
      %s30 = ssub.s32 1024, 1024
      %31 = vsyncadd [#allocation6], %s30
      %s32 = sshll.u32 [#allocation5], 4
      %s33 = int_to_ptr.vmem [resolvable:$true] %s32
      %38 = dma.hbm_to_vmem [thread:$0]  %s1, 1024, %s33, [#allocation6], 128, 128, 8
    $region9: #{tpu_custom_call.1} parent=1 // pred_fallthru
      _
    // Predicated region
    $region10: #{tpu_custom_call.1} parent=1 // pred_check
      _
    $region11: #{tpu_custom_call.1} parent=1 // pred_check_branch
      %40 = sbr.rel (0) target = $region13
    $region12: #{tpu_custom_call.1} parent=1 // pred_region
      %s42 = ssub.s32 2048, 2048
      %43 = vsyncadd [#allocation6], %s42
      %s44 = sshll.u32 [#allocation7], 4
      %s45 = int_to_ptr.vmem [resolvable:$true] %s44
      %50 = dma.hbm_to_vmem [thread:$0]  %s2, 2048, %s45, [#allocation6], 128, 128, 8
    $region13: #{tpu_custom_call.1} parent=1 // pred_fallthru
      _
    // Predicated region
    $region14: #{tpu_custom_call.1} parent=1 // pred_check
      _
    $region15: #{tpu_custom_call.1} parent=1 // pred_check_branch
      %52 = sbr.rel (0) target = $region17
    $region16: #{tpu_custom_call.1} parent=1 // pred_region
      %s54 = ssub.s32 2048, 2048
      %55 = vsyncadd [#allocation9], %s54
      %s56 = sshll.u32 [#allocation8], 4
      %s57 = int_to_ptr.vmem [resolvable:$true] %s56
      %62 = dma.hbm_to_vmem [thread:$0]  %s3, 2048, %s57, [#allocation9], 64, 64, 4
    $region17: #{tpu_custom_call.1} parent=1 // pred_fallthru
      _
    // Predicated region
    $region18: #{tpu_custom_call.1} parent=1 // pred_check
      _
    $region19: #{tpu_custom_call.1} parent=1 // pred_check_branch
      %64 = sbr.rel (0) target = $region21
    $region20: #{tpu_custom_call.1} parent=1 // pred_region
      %s66 = ssub.s32 2048, 2048
      %67 = vsyncadd [#allocation9], %s66
      %s68 = sshll.u32 [#allocation10], 4
      %s69 = int_to_ptr.vmem [resolvable:$true] %s68
      %74 = dma.hbm_to_vmem [thread:$0]  %s4, 2048, %s69, [#allocation9], 64, 64, 4
    $region21: #{tpu_custom_call.1} parent=1 // pred_fallthru
      _
    // Predicated region
    $region22: #{tpu_custom_call.1} parent=1 // pred_check
      _
    $region23: #{tpu_custom_call.1} parent=1 // pred_check_branch
      %76 = sbr.rel (0) target = $region25
    $region24: #{tpu_custom_call.1} parent=1 // pred_region
      _
    $region25: #{tpu_custom_call.1} parent=1 // pred_fallthru
      _
    // Predicated region
    $region26: #{tpu_custom_call.1} parent=1 // pred_check
      _
    $region27: #{tpu_custom_call.1} parent=1 // pred_check_branch
      %78 = sbr.rel (0) target = $region29
    $region28: #{tpu_custom_call.1} parent=1 // pred_region
      %79 = dma.done [#allocation3], 256
    $region29: #{tpu_custom_call.1} parent=1 // pred_fallthru
      _
    // Predicated region
    $region30: #{tpu_custom_call.1} parent=1 // pred_check
      _
    $region31: #{tpu_custom_call.1} parent=1 // pred_check_branch
      %81 = sbr.rel (0) target = $region33
    $region32: #{tpu_custom_call.1} parent=1 // pred_region
      %82 = dma.done [#allocation6], 1024
    $region33: #{tpu_custom_call.1} parent=1 // pred_fallthru
      _
    // Predicated region
    $region34: #{tpu_custom_call.1} parent=1 // pred_check
      _
    $region35: #{tpu_custom_call.1} parent=1 // pred_check_branch
      %84 = sbr.rel (0) target = $region37
    $region36: #{tpu_custom_call.1} parent=1 // pred_region
      %85 = dma.done [#allocation6], 2048
    $region37: #{tpu_custom_call.1} parent=1 // pred_fallthru
      _
    // Predicated region
    $region38: #{tpu_custom_call.1} parent=1 // pred_check
      _
    $region39: #{tpu_custom_call.1} parent=1 // pred_check_branch
      %87 = sbr.rel (0) target = $region41
    $region40: #{tpu_custom_call.1} parent=1 // pred_region
      %88 = dma.done [#allocation9], 2048
    $region41: #{tpu_custom_call.1} parent=1 // pred_fallthru
      _
    // Predicated region
    $region42: #{tpu_custom_call.1} parent=1 // pred_check
      _
    $region43: #{tpu_custom_call.1} parent=1 // pred_check_branch
      %90 = sbr.rel (0) target = $region45
    $region44: #{tpu_custom_call.1} parent=1 // pred_region
      %91 = dma.done [#allocation9], 2048
    $region45: #{tpu_custom_call.1} parent=1 // pred_fallthru
      _
    %v93 = vld [vmem:[#allocation2] sm:$0xf]
    %v94 = vld [vmem:[#allocation2 + $0x4] sm:$0xf]
    %v95 = vld [vmem:[#allocation2 + $0x8] sm:$0xf]
    %v96 = vld [vmem:[#allocation2 + $0xc] sm:$0xf]
    %v97 = vld [vmem:[#allocation5] sm:$0xff]
    %v98 = vld [vmem:[#allocation5 + $0x8] sm:$0xff]
    %v99 = vld [vmem:[#allocation5 + $0x10] sm:$0xff]
    %v100 = vld [vmem:[#allocation5 + $0x18] sm:$0xff]
    %v101 = vld [vmem:[#allocation5 + $0x20] sm:$0xff]
    %v102 = vld [vmem:[#allocation5 + $0x28] sm:$0xff]
    %v103 = vld [vmem:[#allocation5 + $0x30] sm:$0xff]
    %v104 = vld [vmem:[#allocation5 + $0x38] sm:$0xff]
    %v109 = vunpack.c.l.b16 %v93
    %v110 = vunpack.c.l.b16 %v94
    %v111 = vunpack.c.l.b16 %v95
    %v112 = vunpack.c.l.b16 %v96
    %v113 = vpack.c.b16 %v110, %v109
    %v114 = vpack.c.b16 %v112, %v111
    %v123 = vunpack.c.l.b16 %v97
    %v124 = vunpack.c.h.b16 %v97
    %v125 = vunpack.c.l.b16 %v98
    %v126 = vunpack.c.h.b16 %v98
    %v127 = vunpack.c.l.b16 %v99
    %v128 = vunpack.c.h.b16 %v99
    %v129 = vunpack.c.l.b16 %v100
    %v130 = vunpack.c.h.b16 %v100
    %v131 = vunpack.c.l.b16 %v101
    %v132 = vunpack.c.h.b16 %v101
    %v133 = vunpack.c.l.b16 %v102
    %v134 = vunpack.c.h.b16 %v102
    %v135 = vunpack.c.l.b16 %v103
    %v136 = vunpack.c.h.b16 %v103
    %v137 = vunpack.c.l.b16 %v104
    %v138 = vunpack.c.h.b16 %v104
    %v139 = vpack.c.b16 %v125, %v123
    %v140 = vpack.c.b16 %v126, %v124
    %v141 = vpack.c.b16 %v129, %v127
    %v142 = vpack.c.b16 %v130, %v128
    %v143 = vpack.c.b16 %v133, %v131
    %v144 = vpack.c.b16 %v134, %v132
    %v145 = vpack.c.b16 %v137, %v135
    %v146 = vpack.c.b16 %v138, %v136
    %vm155 = vcmask 523264
    %v157 = vsel %vm155, %v113, 0
    %v160 = vsel %vm155, %v114, 0
    %162 = vmatprep.subr.bf16.mxu0 %v140
    %163 = vmatpush1.bf16.msra.mxu0 %v139
    %164 = vmatprep.subr.bf16.mxu0 %v142
    %165 = vmatpush1.bf16.msra.mxu0 %v141
    %166 = vmatprep.subr.bf16.mxu0 %v144
    %167 = vmatpush1.bf16.msra.mxu0 %v143
    %168 = vmatprep.subr.bf16.mxu0 %v146
    %169 = vmatpush1.bf16.msra.mxu0 %v145
    %170 = vmatprep.subr.bf16.mxu0 0
    %171 = vmatpush1.bf16.msra.mxu0 0
    %172 = vmatprep.subr.bf16.mxu0 0
    %173 = vmatpush1.bf16.msra.mxu0 0
    %174 = vmatprep.subr.bf16.mxu0 0
    %175 = vmatpush1.bf16.msra.mxu0 0
    %176 = vmatprep.subr.bf16.mxu0 0
    %177 = vmatpush1.bf16.msra.mxu0 0
    %178 = vmatprep.subr.bf16.mxu0 0
    %179 = vmatpush1.bf16.msra.mxu0 0
    %180 = vmatprep.subr.bf16.mxu0 0
    %181 = vmatpush1.bf16.msra.mxu0 0
    %182 = vmatprep.subr.bf16.mxu0 0
    %183 = vmatpush1.bf16.msra.mxu0 0
    %184 = vmatprep.subr.bf16.mxu0 0
    %185 = vmatpush1.bf16.msra.mxu0 0
    %186 = vmatprep.subr.bf16.mxu0 0
    %187 = vmatpush1.bf16.msra.mxu0 0
    %188 = vmatprep.subr.bf16.mxu0 0
    %189 = vmatpush1.bf16.msra.mxu0 0
    %190 = vmatprep.subr.bf16.mxu0 0
    %191 = vmatpush1.bf16.msra.mxu0 0
    %192 = vmatprep.subr.bf16.mxu0 0
    %193 = vmatpush1.bf16.msra.mxu0 0
    %194 = vmatprep.mubr.bf16.mxu0 0
    %195 = vmatmul.mubr.bf16.gmra.mrb[0].mxu0 %v157
    %v196 = vpop.f32.mrb[0].mxu0
    %v197 = vadd.f32 0.0, %v196
    %v198 = vpop.f32.mrb[0].mxu0
    %v199 = vadd.f32 0.0, %v198
    %v200 = vpop.f32.mrb[0].mxu0
    %v201 = vadd.f32 0.0, %v200
    %v202 = vpop.f32.mrb[0].mxu0
    %v203 = vadd.f32 0.0, %v202
    %204 = vmatprep.mubr.bf16.mxu0 0
    %205 = vmatmul.mubr.bf16.gmra.mrb[0].mxu0 %v160
    %v206 = vpop.f32.mrb[0].mxu0
    %v207 = vadd.f32 0.0, %v206
    %v208 = vpop.f32.mrb[0].mxu0
    %v209 = vadd.f32 0.0, %v208
    %v210 = vpop.f32.mrb[0].mxu0
    %v211 = vadd.f32 0.0, %v210
    %v212 = vpop.f32.mrb[0].mxu0
    %v213 = vadd.f32 0.0, %v212
    %214 = vdwg.mxu0
    %v215 = vld [vmem:[#allocation7] sm:$0xff]
    %v216 = vld [vmem:[#allocation7 + $0x8] sm:$0xff]
    %v217 = vld [vmem:[#allocation7 + $0x10] sm:$0xff]
    %v218 = vld [vmem:[#allocation7 + $0x18] sm:$0xff]
    %v219 = vld [vmem:[#allocation7 + $0x20] sm:$0xff]
    %v220 = vld [vmem:[#allocation7 + $0x28] sm:$0xff]
    %v221 = vld [vmem:[#allocation7 + $0x30] sm:$0xff]
    %v222 = vld [vmem:[#allocation7 + $0x38] sm:$0xff]
    %v223 = vld [vmem:[#allocation7 + $0x40] sm:$0xff]
    %v224 = vld [vmem:[#allocation7 + $0x48] sm:$0xff]
    %v225 = vld [vmem:[#allocation7 + $0x50] sm:$0xff]
    %v226 = vld [vmem:[#allocation7 + $0x58] sm:$0xff]
    %v227 = vld [vmem:[#allocation7 + $0x60] sm:$0xff]
    %v228 = vld [vmem:[#allocation7 + $0x68] sm:$0xff]
    %v229 = vld [vmem:[#allocation7 + $0x70] sm:$0xff]
    %v230 = vld [vmem:[#allocation7 + $0x78] sm:$0xff]
    %v231 = vpack.c.bf16 %v201, %v197
    %v232 = vpack.c.bf16 %v211, %v207
    %v249 = vunpack.c.l.b16 %v215
    %v250 = vunpack.c.h.b16 %v215
    %v251 = vunpack.c.l.b16 %v216
    %v252 = vunpack.c.h.b16 %v216
    %v253 = vunpack.c.l.b16 %v217
    %v254 = vunpack.c.h.b16 %v217
    %v255 = vunpack.c.l.b16 %v218
    %v256 = vunpack.c.h.b16 %v218
    %v257 = vunpack.c.l.b16 %v219
    %v258 = vunpack.c.h.b16 %v219
    %v259 = vunpack.c.l.b16 %v220
    %v260 = vunpack.c.h.b16 %v220
    %v261 = vunpack.c.l.b16 %v221
    %v262 = vunpack.c.h.b16 %v221
    %v263 = vunpack.c.l.b16 %v222
    %v264 = vunpack.c.h.b16 %v222
    %v265 = vunpack.c.l.b16 %v223
    %v266 = vunpack.c.h.b16 %v223
    %v267 = vunpack.c.l.b16 %v224
    %v268 = vunpack.c.h.b16 %v224
    %v269 = vunpack.c.l.b16 %v225
    %v270 = vunpack.c.h.b16 %v225
    %v271 = vunpack.c.l.b16 %v226
    %v272 = vunpack.c.h.b16 %v226
    %v273 = vunpack.c.l.b16 %v227
    %v274 = vunpack.c.h.b16 %v227
    %v275 = vunpack.c.l.b16 %v228
    %v276 = vunpack.c.h.b16 %v228
    %v277 = vunpack.c.l.b16 %v229
    %v278 = vunpack.c.h.b16 %v229
    %v279 = vunpack.c.l.b16 %v230
    %v280 = vunpack.c.h.b16 %v230
    %v281 = vpack.c.b16 %v251, %v249
    %v282 = vpack.c.b16 %v252, %v250
    %v283 = vpack.c.b16 %v255, %v253
    %v284 = vpack.c.b16 %v256, %v254
    %v285 = vpack.c.b16 %v259, %v257
    %v286 = vpack.c.b16 %v260, %v258
    %v287 = vpack.c.b16 %v263, %v261
    %v288 = vpack.c.b16 %v264, %v262
    %v289 = vpack.c.b16 %v267, %v265
    %v290 = vpack.c.b16 %v268, %v266
    %v291 = vpack.c.b16 %v271, %v269
    %v292 = vpack.c.b16 %v272, %v270
    %v293 = vpack.c.b16 %v275, %v273
    %v294 = vpack.c.b16 %v276, %v274
    %v295 = vpack.c.b16 %v279, %v277
    %v296 = vpack.c.b16 %v280, %v278
    %313 = vmatprep.subr.bf16.mxu0 %v282
    %314 = vmatpush1.bf16.msra.mxu0 %v281
    %315 = vmatprep.subr.bf16.mxu0 %v284
    %316 = vmatpush1.bf16.msra.mxu0 %v283
    %317 = vmatprep.subr.bf16.mxu0 %v286
    %318 = vmatpush1.bf16.msra.mxu0 %v285
    %319 = vmatprep.subr.bf16.mxu0 %v288
    %320 = vmatpush1.bf16.msra.mxu0 %v287
    %321 = vmatprep.subr.bf16.mxu0 %v290
    %322 = vmatpush1.bf16.msra.mxu0 %v289
    %323 = vmatprep.subr.bf16.mxu0 %v292
    %324 = vmatpush1.bf16.msra.mxu0 %v291
    %325 = vmatprep.subr.bf16.mxu0 %v294
    %326 = vmatpush1.bf16.msra.mxu0 %v293
    %327 = vmatprep.subr.bf16.mxu0 %v296
    %328 = vmatpush1.bf16.msra.mxu0 %v295
    %329 = vmatprep.subr.bf16.mxu0 0
    %330 = vmatpush1.bf16.msra.mxu0 0
    %331 = vmatprep.subr.bf16.mxu0 0
    %332 = vmatpush1.bf16.msra.mxu0 0
    %333 = vmatprep.subr.bf16.mxu0 0
    %334 = vmatpush1.bf16.msra.mxu0 0
    %335 = vmatprep.subr.bf16.mxu0 0
    %336 = vmatpush1.bf16.msra.mxu0 0
    %337 = vmatprep.subr.bf16.mxu0 0
    %338 = vmatpush1.bf16.msra.mxu0 0
    %339 = vmatprep.subr.bf16.mxu0 0
    %340 = vmatpush1.bf16.msra.mxu0 0
    %341 = vmatprep.subr.bf16.mxu0 0
    %342 = vmatpush1.bf16.msra.mxu0 0
    %343 = vmatprep.subr.bf16.mxu0 0
    %344 = vmatpush1.bf16.msra.mxu0 0
    %345 = vmatprep.mubr.bf16.mxu0 0
    %346 = vmatmul.mubr.bf16.gmra.mrb[0].mxu0 %v231
    %v347 = vpop.f32.mrb[0].mxu0
    %v348 = vadd.f32 0.0, %v347
    %v349 = vpop.f32.mrb[0].mxu0
    %v350 = vadd.f32 0.0, %v349
    %v351 = vpop.f32.mrb[0].mxu0
    %v352 = vadd.f32 0.0, %v351
    %v353 = vpop.f32.mrb[0].mxu0
    %v354 = vadd.f32 0.0, %v353
    %355 = vmatprep.mubr.bf16.mxu0 0
    %356 = vmatmul.mubr.bf16.gmra.mrb[0].mxu0 %v232
    %v357 = vpop.f32.mrb[0].mxu0
    %v358 = vadd.f32 0.0, %v357
    %v359 = vpop.f32.mrb[0].mxu0
    %v360 = vadd.f32 0.0, %v359
    %v361 = vpop.f32.mrb[0].mxu0
    %v362 = vadd.f32 0.0, %v361
    %v363 = vpop.f32.mrb[0].mxu0
    %v364 = vadd.f32 0.0, %v363
    %365 = vdwg.mxu0
    %v366 = vld [vmem:[%s5] sm:$0x1]
    %v367 = vunpack.c.l.bf16 %v366
    %v368 = vlaneseq
    %v369 = vshrl.u32 %v368, 7
    %v370 = vsub.s32 0, %v369
    %v371 = vrot.slane %v367, %v370
    %v372 = vmul.f32 %v348, %v371
    %s373 = scalar_lea.vmem %s5, 2
    %v374 = vld [vmem:[%s373] sm:$0x1]
    %v375 = vunpack.c.l.bf16 %v374
    %v376 = vlaneseq
    %v377 = vshrl.u32 %v376, 7
    %v378 = vsub.s32 0, %v377
    %v379 = vrot.slane %v375, %v378
    %v380 = vmul.f32 %v352, %v379
    %s381 = scalar_lea.vmem %s5, 4
    %v382 = vld [vmem:[%s381] sm:$0x1]
    %v383 = vunpack.c.l.bf16 %v382
    %v384 = vlaneseq
    %v385 = vshrl.u32 %v384, 7
    %v386 = vsub.s32 0, %v385
    %v387 = vrot.slane %v383, %v386
    %v388 = vmul.f32 %v358, %v387
    %v389 = vadd.f32 %v372, %v388
    %s390 = scalar_lea.vmem %s5, 6
    %v391 = vld [vmem:[%s390] sm:$0x1]
    %v392 = vunpack.c.l.bf16 %v391
    %v393 = vlaneseq
    %v394 = vshrl.u32 %v393, 7
    %v395 = vsub.s32 0, %v394
    %v396 = vrot.slane %v392, %v395
    %v397 = vmul.f32 %v362, %v396
    %v398 = vadd.f32 %v380, %v397
    %v399 = vadd.f32 %v389, %v398
    %v400 = vlaneseq
    %v401 = vshrl.u32 %v400, 7
    %v402 = vsub.s32 1, %v401
    %v403 = vrot.slane %v367, %v402
    %v404 = vmul.f32 %v348, %v403
    %v405 = vlaneseq
    %v406 = vshrl.u32 %v405, 7
    %v407 = vsub.s32 1, %v406
    %v408 = vrot.slane %v375, %v407
    %v409 = vmul.f32 %v352, %v408
    %v410 = vlaneseq
    %v411 = vshrl.u32 %v410, 7
    %v412 = vsub.s32 1, %v411
    %v413 = vrot.slane %v383, %v412
    %v414 = vmul.f32 %v358, %v413
    %v415 = vadd.f32 %v404, %v414
    %v416 = vlaneseq
    %v417 = vshrl.u32 %v416, 7
    %v418 = vsub.s32 1, %v417
    %v419 = vrot.slane %v392, %v418
    %v420 = vmul.f32 %v362, %v419
    %v421 = vadd.f32 %v409, %v420
    %v422 = vadd.f32 %v415, %v421
    %v423 = vld [vmem:[%s5] sm:$0x2]
    %v424 = vunpack.c.l.bf16 %v423
    %v425 = vlaneseq
    %v426 = vshrl.u32 %v425, 7
    %v427 = vsub.s32 2, %v426
    %v428 = vrot.slane %v424, %v427
    %v429 = vmul.f32 %v348, %v428
    %v430 = vld [vmem:[%s373] sm:$0x2]
    %v431 = vunpack.c.l.bf16 %v430
    %v432 = vlaneseq
    %v433 = vshrl.u32 %v432, 7
    %v434 = vsub.s32 2, %v433
    %v435 = vrot.slane %v431, %v434
    %v436 = vmul.f32 %v352, %v435
    %v437 = vld [vmem:[%s381] sm:$0x2]
    %v438 = vunpack.c.l.bf16 %v437
    %v439 = vlaneseq
    %v440 = vshrl.u32 %v439, 7
    %v441 = vsub.s32 2, %v440
    %v442 = vrot.slane %v438, %v441
    %v443 = vmul.f32 %v358, %v442
    %v444 = vadd.f32 %v429, %v443
    %v445 = vld [vmem:[%s390] sm:$0x2]
    %v446 = vunpack.c.l.bf16 %v445
    %v447 = vlaneseq
    %v448 = vshrl.u32 %v447, 7
    %v449 = vsub.s32 2, %v448
    %v450 = vrot.slane %v446, %v449
    %v451 = vmul.f32 %v362, %v450
    %v452 = vadd.f32 %v436, %v451
    %v453 = vadd.f32 %v444, %v452
    %v454 = vlaneseq
    %v455 = vshrl.u32 %v454, 7
    %v456 = vsub.s32 3, %v455
    %v457 = vrot.slane %v424, %v456
    %v458 = vmul.f32 %v348, %v457
    %v459 = vlaneseq
    %v460 = vshrl.u32 %v459, 7
    %v461 = vsub.s32 3, %v460
    %v462 = vrot.slane %v431, %v461
    %v463 = vmul.f32 %v352, %v462
    %v464 = vlaneseq
    %v465 = vshrl.u32 %v464, 7
    %v466 = vsub.s32 3, %v465
    %v467 = vrot.slane %v438, %v466
    %v468 = vmul.f32 %v358, %v467
    %v469 = vadd.f32 %v458, %v468
    %v470 = vlaneseq
    %v471 = vshrl.u32 %v470, 7
    %v472 = vsub.s32 3, %v471
    %v473 = vrot.slane %v446, %v472
    %v474 = vmul.f32 %v362, %v473
    %v475 = vadd.f32 %v463, %v474
    %v476 = vadd.f32 %v469, %v475
    %v477 = vmul.f32 %v350, %v371
    %v478 = vmul.f32 %v354, %v379
    %v479 = vmul.f32 %v360, %v387
    %v480 = vadd.f32 %v477, %v479
    %v481 = vmul.f32 %v364, %v396
    %v482 = vadd.f32 %v478, %v481
    %v483 = vadd.f32 %v480, %v482
    %v484 = vmul.f32 %v350, %v403
    %v485 = vmul.f32 %v354, %v408
    %v486 = vmul.f32 %v360, %v413
    %v487 = vadd.f32 %v484, %v486
    %v488 = vmul.f32 %v364, %v419
    %v489 = vadd.f32 %v485, %v488
    %v490 = vadd.f32 %v487, %v489
    %v491 = vmul.f32 %v350, %v428
    %v492 = vmul.f32 %v354, %v435
    %v493 = vmul.f32 %v360, %v442
    %v494 = vadd.f32 %v491, %v493
    %v495 = vmul.f32 %v364, %v450
    %v496 = vadd.f32 %v492, %v495
    %v497 = vadd.f32 %v494, %v496
    %v498 = vmul.f32 %v350, %v457
    %v499 = vmul.f32 %v354, %v462
    %v500 = vmul.f32 %v360, %v467
    %v501 = vadd.f32 %v498, %v500
    %v502 = vmul.f32 %v364, %v473
    %v503 = vadd.f32 %v499, %v502
    %v504 = vadd.f32 %v501, %v503
    %v505 = vld [vmem:[#allocation8] sm:$0xf]
    %v506 = vld [vmem:[#allocation8 + $0x4] sm:$0xf]
    %v507 = vld [vmem:[#allocation8 + $0x8] sm:$0xf]
    %v508 = vld [vmem:[#allocation8 + $0xc] sm:$0xf]
    %v509 = vld [vmem:[#allocation8 + $0x10] sm:$0xf]
    %v510 = vld [vmem:[#allocation8 + $0x14] sm:$0xf]
    %v511 = vld [vmem:[#allocation8 + $0x18] sm:$0xf]
    %v512 = vld [vmem:[#allocation8 + $0x1c] sm:$0xf]
    %v513 = vld [vmem:[#allocation8 + $0x20] sm:$0xf]
    %v514 = vld [vmem:[#allocation8 + $0x24] sm:$0xf]
    %v515 = vld [vmem:[#allocation8 + $0x28] sm:$0xf]
    %v516 = vld [vmem:[#allocation8 + $0x2c] sm:$0xf]
    %v517 = vld [vmem:[#allocation8 + $0x30] sm:$0xf]
    %v518 = vld [vmem:[#allocation8 + $0x34] sm:$0xf]
    %v519 = vld [vmem:[#allocation8 + $0x38] sm:$0xf]
    %v520 = vld [vmem:[#allocation8 + $0x3c] sm:$0xf]
    %v521 = vld [vmem:[#allocation8 + $0x40] sm:$0xf]
    %v522 = vld [vmem:[#allocation8 + $0x44] sm:$0xf]
    %v523 = vld [vmem:[#allocation8 + $0x48] sm:$0xf]
    %v524 = vld [vmem:[#allocation8 + $0x4c] sm:$0xf]
    %v525 = vld [vmem:[#allocation8 + $0x50] sm:$0xf]
    %v526 = vld [vmem:[#allocation8 + $0x54] sm:$0xf]
    %v527 = vld [vmem:[#allocation8 + $0x58] sm:$0xf]
    %v528 = vld [vmem:[#allocation8 + $0x5c] sm:$0xf]
    %v529 = vld [vmem:[#allocation8 + $0x60] sm:$0xf]
    %v530 = vld [vmem:[#allocation8 + $0x64] sm:$0xf]
    %v531 = vld [vmem:[#allocation8 + $0x68] sm:$0xf]
    %v532 = vld [vmem:[#allocation8 + $0x6c] sm:$0xf]
    %v533 = vld [vmem:[#allocation8 + $0x70] sm:$0xf]
    %v534 = vld [vmem:[#allocation8 + $0x74] sm:$0xf]
    %v535 = vld [vmem:[#allocation8 + $0x78] sm:$0xf]
    %v536 = vld [vmem:[#allocation8 + $0x7c] sm:$0xf]
    %v537 = vpack.c.bf16 %v422, %v399
    %v538 = vpack.c.bf16 %v476, %v453
    %v539 = vpack.c.bf16 %v490, %v483
    %v540 = vpack.c.bf16 %v504, %v497
    %v573 = vunpack.c.l.b16 %v505
    %v574 = vunpack.c.l.b16 %v506
    %v575 = vunpack.c.l.b16 %v507
    %v576 = vunpack.c.l.b16 %v508
    %v577 = vunpack.c.l.b16 %v509
    %v578 = vunpack.c.l.b16 %v510
    %v579 = vunpack.c.l.b16 %v511
    %v580 = vunpack.c.l.b16 %v512
    %v581 = vunpack.c.l.b16 %v513
    %v582 = vunpack.c.l.b16 %v514
    %v583 = vunpack.c.l.b16 %v515
    %v584 = vunpack.c.l.b16 %v516
    %v585 = vunpack.c.l.b16 %v517
    %v586 = vunpack.c.l.b16 %v518
    %v587 = vunpack.c.l.b16 %v519
    %v588 = vunpack.c.l.b16 %v520
    %v589 = vunpack.c.l.b16 %v521
    %v590 = vunpack.c.l.b16 %v522
    %v591 = vunpack.c.l.b16 %v523
    %v592 = vunpack.c.l.b16 %v524
    %v593 = vunpack.c.l.b16 %v525
    %v594 = vunpack.c.l.b16 %v526
    %v595 = vunpack.c.l.b16 %v527
    %v596 = vunpack.c.l.b16 %v528
    %v597 = vunpack.c.l.b16 %v529
    %v598 = vunpack.c.l.b16 %v530
    %v599 = vunpack.c.l.b16 %v531
    %v600 = vunpack.c.l.b16 %v532
    %v601 = vunpack.c.l.b16 %v533
    %v602 = vunpack.c.l.b16 %v534
    %v603 = vunpack.c.l.b16 %v535
    %v604 = vunpack.c.l.b16 %v536
    %v605 = vpack.c.b16 %v574, %v573
    %v606 = vpack.c.b16 %v576, %v575
    %v607 = vpack.c.b16 %v578, %v577
    %v608 = vpack.c.b16 %v580, %v579
    %v609 = vpack.c.b16 %v582, %v581
    %v610 = vpack.c.b16 %v584, %v583
    %v611 = vpack.c.b16 %v586, %v585
    %v612 = vpack.c.b16 %v588, %v587
    %v613 = vpack.c.b16 %v590, %v589
    %v614 = vpack.c.b16 %v592, %v591
    %v615 = vpack.c.b16 %v594, %v593
    %v616 = vpack.c.b16 %v596, %v595
    %v617 = vpack.c.b16 %v598, %v597
    %v618 = vpack.c.b16 %v600, %v599
    %v619 = vpack.c.b16 %v602, %v601
    %v620 = vpack.c.b16 %v604, %v603
    %637 = vmatprep.subr.bf16.mxu0 0
    %638 = vmatpush1.bf16.msra.mxu0 %v605
    %639 = vmatprep.subr.bf16.mxu0 0
    %640 = vmatpush1.bf16.msra.mxu0 %v606
    %641 = vmatprep.subr.bf16.mxu0 0
    %642 = vmatpush1.bf16.msra.mxu0 %v607
    %643 = vmatprep.subr.bf16.mxu0 0
    %644 = vmatpush1.bf16.msra.mxu0 %v608
    %645 = vmatprep.subr.bf16.mxu0 0
    %646 = vmatpush1.bf16.msra.mxu0 %v609
    %647 = vmatprep.subr.bf16.mxu0 0
    %648 = vmatpush1.bf16.msra.mxu0 %v610
    %649 = vmatprep.subr.bf16.mxu0 0
    %650 = vmatpush1.bf16.msra.mxu0 %v611
    %651 = vmatprep.subr.bf16.mxu0 0
    %652 = vmatpush1.bf16.msra.mxu0 %v612
    %653 = vmatprep.subr.bf16.mxu0 0
    %654 = vmatpush1.bf16.msra.mxu0 %v613
    %655 = vmatprep.subr.bf16.mxu0 0
    %656 = vmatpush1.bf16.msra.mxu0 %v614
    %657 = vmatprep.subr.bf16.mxu0 0
    %658 = vmatpush1.bf16.msra.mxu0 %v615
    %659 = vmatprep.subr.bf16.mxu0 0
    %660 = vmatpush1.bf16.msra.mxu0 %v616
    %661 = vmatprep.subr.bf16.mxu0 0
    %662 = vmatpush1.bf16.msra.mxu0 %v617
    %663 = vmatprep.subr.bf16.mxu0 0
    %664 = vmatpush1.bf16.msra.mxu0 %v618
    %665 = vmatprep.subr.bf16.mxu0 0
    %666 = vmatpush1.bf16.msra.mxu0 %v619
    %667 = vmatprep.subr.bf16.mxu0 0
    %668 = vmatpush1.bf16.msra.mxu0 %v620
    %669 = vmatprep.mubr.bf16.mxu0 %v539
    %670 = vmatmul.mubr.bf16.gmra.mrb[0].mxu0 %v537
    %v671 = vpop.f32.mrb[0].mxu0
    %v672 = vadd.f32 0.0, %v671
    %v673 = vpop.f32.mrb[0].mxu0
    %v674 = vpop.f32.mrb[0].mxu0
    %v675 = vadd.f32 0.0, %v674
    %v676 = vpop.f32.mrb[0].mxu0
    %677 = vmatprep.mubr.bf16.mxu0 %v540
    %678 = vmatmul.mubr.bf16.gmra.mrb[0].mxu0 %v538
    %v679 = vpop.f32.mrb[0].mxu0
    %v680 = vadd.f32 0.0, %v679
    %v681 = vpop.f32.mrb[0].mxu0
    %v682 = vpop.f32.mrb[0].mxu0
    %v683 = vadd.f32 0.0, %v682
    %v684 = vpop.f32.mrb[0].mxu0
    %685 = vdwg.mxu0
    %v686 = vld [vmem:[#allocation10] sm:$0xf]
    %v687 = vld [vmem:[#allocation10 + $0x4] sm:$0xf]
    %v688 = vld [vmem:[#allocation10 + $0x8] sm:$0xf]
    %v689 = vld [vmem:[#allocation10 + $0xc] sm:$0xf]
    %v690 = vld [vmem:[#allocation10 + $0x10] sm:$0xf]
    %v691 = vld [vmem:[#allocation10 + $0x14] sm:$0xf]
    %v692 = vld [vmem:[#allocation10 + $0x18] sm:$0xf]
    %v693 = vld [vmem:[#allocation10 + $0x1c] sm:$0xf]
    %v694 = vld [vmem:[#allocation10 + $0x20] sm:$0xf]
    %v695 = vld [vmem:[#allocation10 + $0x24] sm:$0xf]
    %v696 = vld [vmem:[#allocation10 + $0x28] sm:$0xf]
    %v697 = vld [vmem:[#allocation10 + $0x2c] sm:$0xf]
    %v698 = vld [vmem:[#allocation10 + $0x30] sm:$0xf]
    %v699 = vld [vmem:[#allocation10 + $0x34] sm:$0xf]
    %v700 = vld [vmem:[#allocation10 + $0x38] sm:$0xf]
    %v701 = vld [vmem:[#allocation10 + $0x3c] sm:$0xf]
    %v702 = vld [vmem:[#allocation10 + $0x40] sm:$0xf]
    %v703 = vld [vmem:[#allocation10 + $0x44] sm:$0xf]
    %v704 = vld [vmem:[#allocation10 + $0x48] sm:$0xf]
    %v705 = vld [vmem:[#allocation10 + $0x4c] sm:$0xf]
    %v706 = vld [vmem:[#allocation10 + $0x50] sm:$0xf]
    %v707 = vld [vmem:[#allocation10 + $0x54] sm:$0xf]
    %v708 = vld [vmem:[#allocation10 + $0x58] sm:$0xf]
    %v709 = vld [vmem:[#allocation10 + $0x5c] sm:$0xf]
    %v710 = vld [vmem:[#allocation10 + $0x60] sm:$0xf]
    %v711 = vld [vmem:[#allocation10 + $0x64] sm:$0xf]
    %v712 = vld [vmem:[#allocation10 + $0x68] sm:$0xf]
    %v713 = vld [vmem:[#allocation10 + $0x6c] sm:$0xf]
    %v714 = vld [vmem:[#allocation10 + $0x70] sm:$0xf]
    %v715 = vld [vmem:[#allocation10 + $0x74] sm:$0xf]
    %v716 = vld [vmem:[#allocation10 + $0x78] sm:$0xf]
    %v717 = vld [vmem:[#allocation10 + $0x7c] sm:$0xf]
    %v718 = vpack.c.bf16 %v675, %v672
    %v719 = vpack.c.bf16 %v683, %v680
    %v720 = vpack.c.bf16 %v203, %v199
    %v721 = vpack.c.bf16 %v213, %v209
    %v754 = vunpack.c.l.b16 %v686
    %v755 = vunpack.c.l.b16 %v687
    %v756 = vunpack.c.l.b16 %v688
    %v757 = vunpack.c.l.b16 %v689
    %v758 = vunpack.c.l.b16 %v690
    %v759 = vunpack.c.l.b16 %v691
    %v760 = vunpack.c.l.b16 %v692
    %v761 = vunpack.c.l.b16 %v693
    %v762 = vunpack.c.l.b16 %v694
    %v763 = vunpack.c.l.b16 %v695
    %v764 = vunpack.c.l.b16 %v696
    %v765 = vunpack.c.l.b16 %v697
    %v766 = vunpack.c.l.b16 %v698
    %v767 = vunpack.c.l.b16 %v699
    %v768 = vunpack.c.l.b16 %v700
    %v769 = vunpack.c.l.b16 %v701
    %v770 = vunpack.c.l.b16 %v702
    %v771 = vunpack.c.l.b16 %v703
    %v772 = vunpack.c.l.b16 %v704
    %v773 = vunpack.c.l.b16 %v705
    %v774 = vunpack.c.l.b16 %v706
    %v775 = vunpack.c.l.b16 %v707
    %v776 = vunpack.c.l.b16 %v708
    %v777 = vunpack.c.l.b16 %v709
    %v778 = vunpack.c.l.b16 %v710
    %v779 = vunpack.c.l.b16 %v711
    %v780 = vunpack.c.l.b16 %v712
    %v781 = vunpack.c.l.b16 %v713
    %v782 = vunpack.c.l.b16 %v714
    %v783 = vunpack.c.l.b16 %v715
    %v784 = vunpack.c.l.b16 %v716
    %v785 = vunpack.c.l.b16 %v717
    %v786 = vpack.c.b16 %v755, %v754
    %v787 = vpack.c.b16 %v757, %v756
    %v788 = vpack.c.b16 %v759, %v758
    %v789 = vpack.c.b16 %v761, %v760
    %v790 = vpack.c.b16 %v763, %v762
    %v791 = vpack.c.b16 %v765, %v764
    %v792 = vpack.c.b16 %v767, %v766
    %v793 = vpack.c.b16 %v769, %v768
    %v794 = vpack.c.b16 %v771, %v770
    %v795 = vpack.c.b16 %v773, %v772
    %v796 = vpack.c.b16 %v775, %v774
    %v797 = vpack.c.b16 %v777, %v776
    %v798 = vpack.c.b16 %v779, %v778
    %v799 = vpack.c.b16 %v781, %v780
    %v800 = vpack.c.b16 %v783, %v782
    %v801 = vpack.c.b16 %v785, %v784
    %818 = vmatprep.subr.bf16.mxu0 0
    %819 = vmatpush1.bf16.msra.mxu0 %v786
    %820 = vmatprep.subr.bf16.mxu0 0
    %821 = vmatpush1.bf16.msra.mxu0 %v787
    %822 = vmatprep.subr.bf16.mxu0 0
    %823 = vmatpush1.bf16.msra.mxu0 %v788
    %824 = vmatprep.subr.bf16.mxu0 0
    %825 = vmatpush1.bf16.msra.mxu0 %v789
    %826 = vmatprep.subr.bf16.mxu0 0
    %827 = vmatpush1.bf16.msra.mxu0 %v790
    %828 = vmatprep.subr.bf16.mxu0 0
    %829 = vmatpush1.bf16.msra.mxu0 %v791
    %830 = vmatprep.subr.bf16.mxu0 0
    %831 = vmatpush1.bf16.msra.mxu0 %v792
    %832 = vmatprep.subr.bf16.mxu0 0
    %833 = vmatpush1.bf16.msra.mxu0 %v793
    %834 = vmatprep.subr.bf16.mxu0 0
    %835 = vmatpush1.bf16.msra.mxu0 %v794
    %836 = vmatprep.subr.bf16.mxu0 0
    %837 = vmatpush1.bf16.msra.mxu0 %v795
    %838 = vmatprep.subr.bf16.mxu0 0
    %839 = vmatpush1.bf16.msra.mxu0 %v796
    %840 = vmatprep.subr.bf16.mxu0 0
    %841 = vmatpush1.bf16.msra.mxu0 %v797
    %842 = vmatprep.subr.bf16.mxu0 0
    %843 = vmatpush1.bf16.msra.mxu0 %v798
    %844 = vmatprep.subr.bf16.mxu0 0
    %845 = vmatpush1.bf16.msra.mxu0 %v799
    %846 = vmatprep.subr.bf16.mxu0 0
    %847 = vmatpush1.bf16.msra.mxu0 %v800
    %848 = vmatprep.subr.bf16.mxu0 0
    %849 = vmatpush1.bf16.msra.mxu0 %v801
    %850 = vmatprep.mubr.bf16.mxu0 %v720
    %851 = vmatmul.mubr.bf16.gmra.mrb[0].mxu0 %v718
    %v852 = vpop.f32.mrb[0].mxu0
    %v853 = vadd.f32 0.0, %v852
    %v854 = vpop.f32.mrb[0].mxu0
    %v855 = vpop.f32.mrb[0].mxu0
    %v856 = vadd.f32 0.0, %v855
    %v857 = vpop.f32.mrb[0].mxu0
    %858 = vmatprep.mubr.bf16.mxu0 %v721
    %859 = vmatmul.mubr.bf16.gmra.mrb[0].mxu0 %v719
    %v860 = vpop.f32.mrb[0].mxu0
    %v861 = vadd.f32 0.0, %v860
    %v862 = vpop.f32.mrb[0].mxu0
    %v863 = vpop.f32.mrb[0].mxu0
    %v864 = vadd.f32 0.0, %v863
    %v865 = vpop.f32.mrb[0].mxu0
    %866 = vdwg.mxu0
    %867 = vst [vmem:[#allocation11] sm:$0xff] %v853
    %868 = vst [vmem:[#allocation11 + $0x8] sm:$0xff] %v856
    %869 = vst [vmem:[#allocation11 + $0x10] sm:$0xff] %v861
    %870 = vst [vmem:[#allocation11 + $0x18] sm:$0xff] %v864
    // Predicated region
    $region46: #{tpu_custom_call.1} parent=1 // pred_check
      _
    $region47: #{tpu_custom_call.1} parent=1 // pred_check_branch
      %872 = sbr.rel (0) target = $region49
    $region48: #{tpu_custom_call.1} parent=1 // pred_region
      %s874 = ssub.s32 512, 512
      %875 = vsyncadd [#allocation4], %s874
      %s876 = sshll.u32 [#allocation11], 4
      %s877 = int_to_ptr.vmem [resolvable:$true] %s876
      %882 = dma.vmem_to_hbm [thread:$0]  %s877, 512, %s6, [#allocation4], 128, 128, 8
    $region49: #{tpu_custom_call.1} parent=1 // pred_fallthru
      _
    // Predicated region
    $region50: #{tpu_custom_call.1} parent=1 // pred_check
      _
    $region51: #{tpu_custom_call.1} parent=1 // pred_check_branch
      %884 = sbr.rel (0) target = $region53
    $region52: #{tpu_custom_call.1} parent=1 // pred_region
      %885 = dma.done [#allocation4], 512
    $region53: #{tpu_custom_call.1} parent=1 // pred_fallthru
      _
    %886 = vsyncpa [#allocation3], 1
    %887 = vsyncpa [#allocation6], 1
    %888 = vsyncpa [#allocation9], 1
    %889 = vsyncpa [#allocation4], 1

// kernel: tpu_custom_call.1
$region0: #{tpu_custom_call.1}
  #allocation0 [shape = 'u32[]', space=smem, size = 0x4, offset = 0x4, fixed_abs, tag = 'smem constant byte address 0x4 - core index']
  #allocation1 [shape = 'u32[144,128]{1,0:T(1,128)}', space=vmem, size = 0x12000, scoped, tag = 'internal scratch']
  %s0 = inlined_call_operand.hbm [shape: bf16[4,8,64], index: 0, kind: input, shape index: {}]
  %s1 = inlined_call_operand.hbm [shape: bf16[64,256], index: 1, kind: input, shape index: {}]
  %s2 = inlined_call_operand.hbm [shape: bf16[128,256], index: 2, kind: input, shape index: {}]
  %s3 = inlined_call_operand.hbm [shape: bf16[256,128], index: 3, kind: input, shape index: {}]
  %s4 = inlined_call_operand.hbm [shape: bf16[256,128], index: 4, kind: input, shape index: {}]
  %s5 = inlined_call_operand.vmem [shape: bf16[4,4,128], index: 5, kind: input, shape index: {}]
  %s6 = inlined_call_operand.hbm [shape: f32[4,8,128], index: 6, kind: output, shape index: {}]
  %s7 = sld [smem:[#allocation0]]
  $region54: #{tpu_custom_call.1} parent=0
    _
  %s9 = ssub.s32 1, %s7
  %s10 = scalar_select 0, %s9, %s7
  $region1: #{tpu_custom_call.1} parent=0
    #allocation2 [shape = 'u8[8192]{0}', space=vmem, size = 0x2000, scoped, tag = 'input window, operand 0, single buffered']
    #allocation3 [shape = 's32[1]{0}', space=sflag, size = 0x4, scoped, tag = 'scoped memory for tpu_custom_call.1']
    #allocation4 [shape = 's32[1]{0}', space=sflag, size = 0x4, scoped, tag = 'scoped memory for tpu_custom_call.1']
    #allocation5 [shape = 'u8[32768]{0}', space=vmem, size = 0x8000, scoped, tag = 'input window, operand 1, single buffered']
    #allocation6 [shape = 's32[1]{0}', space=sflag, size = 0x4, scoped, tag = 'scoped memory for tpu_custom_call.1']
    #allocation7 [shape = 'u8[65536]{0}', space=vmem, size = 0x10000, scoped, tag = 'input window, operand 2, single buffered']
    #allocation8 [shape = 'u8[65536]{0}', space=vmem, size = 0x10000, scoped, tag = 'input window, operand 3, single buffered']
    #allocation9 [shape = 's32[1]{0}', space=sflag, size = 0x4, scoped, tag = 'scoped memory for tpu_custom_call.1']
    #allocation10 [shape = 'u8[65536]{0}', space=vmem, size = 0x10000, scoped, tag = 'input window, operand 4, single buffered']
    #allocation11 [shape = 'u8[16384]{0}', space=vmem, size = 0x4000, scoped, tag = 'output window, operand 0, single buffered']
    %11 = vsyncpa [#allocation3], 0
    %12 = vsyncpa [#allocation6], 0
    %13 = vsyncpa [#allocation9], 0
    %14 = vsyncpa [#allocation4], 0
    // Predicated region
    $region2: #{tpu_custom_call.1} parent=1 // pred_check
      _
    $region3: #{tpu_custom_call.1} parent=1 // pred_check_branch
      %16 = sbr.rel (0) target = $region5
    $region4: #{tpu_custom_call.1} parent=1 // pred_region
      %s18 = ssub.s32 256, 256
      %19 = vsyncadd [#allocation3], %s18
      %s20 = sshll.u32 [#allocation2], 4
      %s21 = int_to_ptr.vmem [resolvable:$true] %s20
      %26 = dma.hbm_to_vmem [thread:$0]  %s0, 256, %s21, [#allocation3], 64, 64, 4
    $region5: #{tpu_custom_call.1} parent=1 // pred_fallthru
      _
    // Predicated region
    $region6: #{tpu_custom_call.1} parent=1 // pred_check
      _
    $region7: #{tpu_custom_call.1} parent=1 // pred_check_branch
      %28 = sbr.rel (0) target = $region9
    $region8: #{tpu_custom_call.1} parent=1 // pred_region
      %s30 = ssub.s32 1024, 1024
      %31 = vsyncadd [#allocation6], %s30
      %s32 = sshll.u32 [#allocation5], 4
      %s33 = int_to_ptr.vmem [resolvable:$true] %s32
      %38 = dma.hbm_to_vmem [thread:$0]  %s1, 1024, %s33, [#allocation6], 128, 128, 8
    $region9: #{tpu_custom_call.1} parent=1 // pred_fallthru
      _
    // Predicated region
    $region10: #{tpu_custom_call.1} parent=1 // pred_check
      _
    $region11: #{tpu_custom_call.1} parent=1 // pred_check_branch
      %40 = sbr.rel (0) target = $region13
    $region12: #{tpu_custom_call.1} parent=1 // pred_region
      %s42 = ssub.s32 2048, 2048
      %43 = vsyncadd [#allocation6], %s42
      %s44 = sshll.u32 [#allocation7], 4
      %s45 = int_to_ptr.vmem [resolvable:$true] %s44
      %50 = dma.hbm_to_vmem [thread:$0]  %s2, 2048, %s45, [#allocation6], 128, 128, 8
    $region13: #{tpu_custom_call.1} parent=1 // pred_fallthru
      _
    // Predicated region
    $region14: #{tpu_custom_call.1} parent=1 // pred_check
      _
    $region15: #{tpu_custom_call.1} parent=1 // pred_check_branch
      %52 = sbr.rel (0) target = $region17
    $region16: #{tpu_custom_call.1} parent=1 // pred_region
      %s54 = ssub.s32 2048, 2048
      %55 = vsyncadd [#allocation9], %s54
      %s56 = sshll.u32 [#allocation8], 4
      %s57 = int_to_ptr.vmem [resolvable:$true] %s56
      %62 = dma.hbm_to_vmem [thread:$0]  %s3, 2048, %s57, [#allocation9], 64, 64, 4
    $region17: #{tpu_custom_call.1} parent=1 // pred_fallthru
      _
    // Predicated region
    $region18: #{tpu_custom_call.1} parent=1 // pred_check
      _
    $region19: #{tpu_custom_call.1} parent=1 // pred_check_branch
      %64 = sbr.rel (0) target = $region21
    $region20: #{tpu_custom_call.1} parent=1 // pred_region
      %s66 = ssub.s32 2048, 2048
      %67 = vsyncadd [#allocation9], %s66
      %s68 = sshll.u32 [#allocation10], 4
      %s69 = int_to_ptr.vmem [resolvable:$true] %s68
      %74 = dma.hbm_to_vmem [thread:$0]  %s4, 2048, %s69, [#allocation9], 64, 64, 4
    $region21: #{tpu_custom_call.1} parent=1 // pred_fallthru
      _
    // Predicated region
    $region22: #{tpu_custom_call.1} parent=1 // pred_check
      _
    $region23: #{tpu_custom_call.1} parent=1 // pred_check_branch
      %76 = sbr.rel (0) target = $region25
    $region24: #{tpu_custom_call.1} parent=1 // pred_region
      _
    $region25: #{tpu_custom_call.1} parent=1 // pred_fallthru
      _
    // Predicated region
    $region26: #{tpu_custom_call.1} parent=1 // pred_check
      _
    $region27: #{tpu_custom_call.1} parent=1 // pred_check_branch
      %78 = sbr.rel (0) target = $region29
    $region28: #{tpu_custom_call.1} parent=1 // pred_region
      %79 = dma.done [#allocation3], 256
    $region29: #{tpu_custom_call.1} parent=1 // pred_fallthru
      _
    // Predicated region
    $region30: #{tpu_custom_call.1} parent=1 // pred_check
      _
    $region31: #{tpu_custom_call.1} parent=1 // pred_check_branch
      %81 = sbr.rel (0) target = $region33
    $region32: #{tpu_custom_call.1} parent=1 // pred_region
      %82 = dma.done [#allocation6], 1024
    $region33: #{tpu_custom_call.1} parent=1 // pred_fallthru
      _
    // Predicated region
    $region34: #{tpu_custom_call.1} parent=1 // pred_check
      _
    $region35: #{tpu_custom_call.1} parent=1 // pred_check_branch
      %84 = sbr.rel (0) target = $region37
    $region36: #{tpu_custom_call.1} parent=1 // pred_region
      %85 = dma.done [#allocation6], 2048
    $region37: #{tpu_custom_call.1} parent=1 // pred_fallthru
      _
    // Predicated region
    $region38: #{tpu_custom_call.1} parent=1 // pred_check
      _
    $region39: #{tpu_custom_call.1} parent=1 // pred_check_branch
      %87 = sbr.rel (0) target = $region41
    $region40: #{tpu_custom_call.1} parent=1 // pred_region
      %88 = dma.done [#allocation9], 2048
    $region41: #{tpu_custom_call.1} parent=1 // pred_fallthru
      _
    // Predicated region
    $region42: #{tpu_custom_call.1} parent=1 // pred_check
      _
    $region43: #{tpu_custom_call.1} parent=1 // pred_check_branch
      %90 = sbr.rel (0) target = $region45
    $region44: #{tpu_custom_call.1} parent=1 // pred_region
      %91 = dma.done [#allocation9], 2048
    $region45: #{tpu_custom_call.1} parent=1 // pred_fallthru
      _
    %v93 = vld [vmem:[#allocation2] sm:$0xf]
    %v94 = vld [vmem:[#allocation2 + $0x4] sm:$0xf]
    %v95 = vld [vmem:[#allocation2 + $0x8] sm:$0xf]
    %v96 = vld [vmem:[#allocation2 + $0xc] sm:$0xf]
    %v97 = vld [vmem:[#allocation5] sm:$0xff]
    %v98 = vld [vmem:[#allocation5 + $0x8] sm:$0xff]
    %v99 = vld [vmem:[#allocation5 + $0x10] sm:$0xff]
    %v100 = vld [vmem:[#allocation5 + $0x18] sm:$0xff]
    %v101 = vld [vmem:[#allocation5 + $0x20] sm:$0xff]
    %v102 = vld [vmem:[#allocation5 + $0x28] sm:$0xff]
    %v103 = vld [vmem:[#allocation5 + $0x30] sm:$0xff]
    %v104 = vld [vmem:[#allocation5 + $0x38] sm:$0xff]
    %v109 = vunpack.c.l.b16 %v93
    %v110 = vunpack.c.l.b16 %v94
    %v111 = vunpack.c.l.b16 %v95
    %v112 = vunpack.c.l.b16 %v96
    %v113 = vpack.c.b16 %v110, %v109
    %v114 = vpack.c.b16 %v112, %v111
    %v123 = vunpack.c.l.b16 %v97
    %v124 = vunpack.c.h.b16 %v97
    %v125 = vunpack.c.l.b16 %v98
    %v126 = vunpack.c.h.b16 %v98
    %v127 = vunpack.c.l.b16 %v99
    %v128 = vunpack.c.h.b16 %v99
    %v129 = vunpack.c.l.b16 %v100
    %v130 = vunpack.c.h.b16 %v100
    %v131 = vunpack.c.l.b16 %v101
    %v132 = vunpack.c.h.b16 %v101
    %v133 = vunpack.c.l.b16 %v102
    %v134 = vunpack.c.h.b16 %v102
    %v135 = vunpack.c.l.b16 %v103
    %v136 = vunpack.c.h.b16 %v103
    %v137 = vunpack.c.l.b16 %v104
    %v138 = vunpack.c.h.b16 %v104
    %v139 = vpack.c.b16 %v125, %v123
    %v140 = vpack.c.b16 %v126, %v124
    %v141 = vpack.c.b16 %v129, %v127
    %v142 = vpack.c.b16 %v130, %v128
    %v143 = vpack.c.b16 %v133, %v131
    %v144 = vpack.c.b16 %v134, %v132
    %v145 = vpack.c.b16 %v137, %v135
    %v146 = vpack.c.b16 %v138, %v136
    %vm155 = vcmask 523264
    %v157 = vsel %vm155, %v113, 0
    %v160 = vsel %vm155, %v114, 0
    %162 = vmatprep.subr.bf16.mxu0 %v140
    %163 = vmatpush1.bf16.msra.mxu0 %v139
    %164 = vmatprep.subr.bf16.mxu0 %v142
    %165 = vmatpush1.bf16.msra.mxu0 %v141
    %166 = vmatprep.subr.bf16.mxu0 %v144
    %167 = vmatpush1.bf16.msra.mxu0 %v143
    %168 = vmatprep.subr.bf16.mxu0 %v146
    %169 = vmatpush1.bf16.msra.mxu0 %v145
    %170 = vmatprep.subr.bf16.mxu0 0
    %171 = vmatpush1.bf16.msra.mxu0 0
    %172 = vmatprep.subr.bf16.mxu0 0
    %173 = vmatpush1.bf16.msra.mxu0 0
    %174 = vmatprep.subr.bf16.mxu0 0
    %175 = vmatpush1.bf16.msra.mxu0 0
    %176 = vmatprep.subr.bf16.mxu0 0
    %177 = vmatpush1.bf16.msra.mxu0 0
    %178 = vmatprep.subr.bf16.mxu0 0
    %179 = vmatpush1.bf16.msra.mxu0 0
    %180 = vmatprep.subr.bf16.mxu0 0
    %181 = vmatpush1.bf16.msra.mxu0 0
    %182 = vmatprep.subr.bf16.mxu0 0
    %183 = vmatpush1.bf16.msra.mxu0 0
    %184 = vmatprep.subr.bf16.mxu0 0
    %185 = vmatpush1.bf16.msra.mxu0 0
    %186 = vmatprep.subr.bf16.mxu0 0
    %187 = vmatpush1.bf16.msra.mxu0 0
    %188 = vmatprep.subr.bf16.mxu0 0
    %189 = vmatpush1.bf16.msra.mxu0 0
    %190 = vmatprep.subr.bf16.mxu0 0
    %191 = vmatpush1.bf16.msra.mxu0 0
    %192 = vmatprep.subr.bf16.mxu0 0
    %193 = vmatpush1.bf16.msra.mxu0 0
    %194 = vmatprep.mubr.bf16.mxu0 0
    %195 = vmatmul.mubr.bf16.gmra.mrb[0].mxu0 %v157
    %v196 = vpop.f32.mrb[0].mxu0
    %v197 = vadd.f32 0.0, %v196
    %v198 = vpop.f32.mrb[0].mxu0
    %v199 = vadd.f32 0.0, %v198
    %v200 = vpop.f32.mrb[0].mxu0
    %v201 = vadd.f32 0.0, %v200
    %v202 = vpop.f32.mrb[0].mxu0
    %v203 = vadd.f32 0.0, %v202
    %204 = vmatprep.mubr.bf16.mxu0 0
    %205 = vmatmul.mubr.bf16.gmra.mrb[0].mxu0 %v160
    %v206 = vpop.f32.mrb[0].mxu0
    %v207 = vadd.f32 0.0, %v206
    %v208 = vpop.f32.mrb[0].mxu0
    %v209 = vadd.f32 0.0, %v208
    %v210 = vpop.f32.mrb[0].mxu0
    %v211 = vadd.f32 0.0, %v210
    %v212 = vpop.f32.mrb[0].mxu0
    %v213 = vadd.f32 0.0, %v212
    %214 = vdwg.mxu0
    %v215 = vld [vmem:[#allocation7] sm:$0xff]
    %v216 = vld [vmem:[#allocation7 + $0x8] sm:$0xff]
    %v217 = vld [vmem:[#allocation7 + $0x10] sm:$0xff]
    %v218 = vld [vmem:[#allocation7 + $0x18] sm:$0xff]
    %v219 = vld [vmem:[#allocation7 + $0x20] sm:$0xff]
    %v220 = vld [vmem:[#allocation7 + $0x28] sm:$0xff]
    %v221 = vld [vmem:[#allocation7 + $0x30] sm:$0xff]
    %v222 = vld [vmem:[#allocation7 + $0x38] sm:$0xff]
    %v223 = vld [vmem:[#allocation7 + $0x40] sm:$0xff]
    %v224 = vld [vmem:[#allocation7 + $0x48] sm:$0xff]
    %v225 = vld [vmem:[#allocation7 + $0x50] sm:$0xff]
    %v226 = vld [vmem:[#allocation7 + $0x58] sm:$0xff]
    %v227 = vld [vmem:[#allocation7 + $0x60] sm:$0xff]
    %v228 = vld [vmem:[#allocation7 + $0x68] sm:$0xff]
    %v229 = vld [vmem:[#allocation7 + $0x70] sm:$0xff]
    %v230 = vld [vmem:[#allocation7 + $0x78] sm:$0xff]
    %v231 = vpack.c.bf16 %v201, %v197
    %v232 = vpack.c.bf16 %v211, %v207
    %v249 = vunpack.c.l.b16 %v215
    %v250 = vunpack.c.h.b16 %v215
    %v251 = vunpack.c.l.b16 %v216
    %v252 = vunpack.c.h.b16 %v216
    %v253 = vunpack.c.l.b16 %v217
    %v254 = vunpack.c.h.b16 %v217
    %v255 = vunpack.c.l.b16 %v218
    %v256 = vunpack.c.h.b16 %v218
    %v257 = vunpack.c.l.b16 %v219
    %v258 = vunpack.c.h.b16 %v219
    %v259 = vunpack.c.l.b16 %v220
    %v260 = vunpack.c.h.b16 %v220
    %v261 = vunpack.c.l.b16 %v221
    %v262 = vunpack.c.h.b16 %v221
    %v263 = vunpack.c.l.b16 %v222
    %v264 = vunpack.c.h.b16 %v222
    %v265 = vunpack.c.l.b16 %v223
    %v266 = vunpack.c.h.b16 %v223
    %v267 = vunpack.c.l.b16 %v224
    %v268 = vunpack.c.h.b16 %v224
    %v269 = vunpack.c.l.b16 %v225
    %v270 = vunpack.c.h.b16 %v225
    %v271 = vunpack.c.l.b16 %v226
    %v272 = vunpack.c.h.b16 %v226
    %v273 = vunpack.c.l.b16 %v227
    %v274 = vunpack.c.h.b16 %v227
    %v275 = vunpack.c.l.b16 %v228
    %v276 = vunpack.c.h.b16 %v228
    %v277 = vunpack.c.l.b16 %v229
    %v278 = vunpack.c.h.b16 %v229
    %v279 = vunpack.c.l.b16 %v230
    %v280 = vunpack.c.h.b16 %v230
    %v281 = vpack.c.b16 %v251, %v249
    %v282 = vpack.c.b16 %v252, %v250
    %v283 = vpack.c.b16 %v255, %v253
    %v284 = vpack.c.b16 %v256, %v254
    %v285 = vpack.c.b16 %v259, %v257
    %v286 = vpack.c.b16 %v260, %v258
    %v287 = vpack.c.b16 %v263, %v261
    %v288 = vpack.c.b16 %v264, %v262
    %v289 = vpack.c.b16 %v267, %v265
    %v290 = vpack.c.b16 %v268, %v266
    %v291 = vpack.c.b16 %v271, %v269
    %v292 = vpack.c.b16 %v272, %v270
    %v293 = vpack.c.b16 %v275, %v273
    %v294 = vpack.c.b16 %v276, %v274
    %v295 = vpack.c.b16 %v279, %v277
    %v296 = vpack.c.b16 %v280, %v278
    %313 = vmatprep.subr.bf16.mxu0 %v282
    %314 = vmatpush1.bf16.msra.mxu0 %v281
    %315 = vmatprep.subr.bf16.mxu0 %v284
    %316 = vmatpush1.bf16.msra.mxu0 %v283
    %317 = vmatprep.subr.bf16.mxu0 %v286
    %318 = vmatpush1.bf16.msra.mxu0 %v285
    %319 = vmatprep.subr.bf16.mxu0 %v288
    %320 = vmatpush1.bf16.msra.mxu0 %v287
    %321 = vmatprep.subr.bf16.mxu0 %v290
    %322 = vmatpush1.bf16.msra.mxu0 %v289
    %323 = vmatprep.subr.bf16.mxu0 %v292
    %324 = vmatpush1.bf16.msra.mxu0 %v291
    %325 = vmatprep.subr.bf16.mxu0 %v294
    %326 = vmatpush1.bf16.msra.mxu0 %v293
    %327 = vmatprep.subr.bf16.mxu0 %v296
    %328 = vmatpush1.bf16.msra.mxu0 %v295
    %329 = vmatprep.subr.bf16.mxu0 0
    %330 = vmatpush1.bf16.msra.mxu0 0
    %331 = vmatprep.subr.bf16.mxu0 0
    %332 = vmatpush1.bf16.msra.mxu0 0
    %333 = vmatprep.subr.bf16.mxu0 0
    %334 = vmatpush1.bf16.msra.mxu0 0
    %335 = vmatprep.subr.bf16.mxu0 0
    %336 = vmatpush1.bf16.msra.mxu0 0
    %337 = vmatprep.subr.bf16.mxu0 0
    %338 = vmatpush1.bf16.msra.mxu0 0
    %339 = vmatprep.subr.bf16.mxu0 0
    %340 = vmatpush1.bf16.msra.mxu0 0
    %341 = vmatprep.subr.bf16.mxu0 0
    %342 = vmatpush1.bf16.msra.mxu0 0
    %343 = vmatprep.subr.bf16.mxu0 0
    %344 = vmatpush1.bf16.msra.mxu0 0
    %345 = vmatprep.mubr.bf16.mxu0 0
    %346 = vmatmul.mubr.bf16.gmra.mrb[0].mxu0 %v231
    %v347 = vpop.f32.mrb[0].mxu0
    %v348 = vadd.f32 0.0, %v347
    %v349 = vpop.f32.mrb[0].mxu0
    %v350 = vadd.f32 0.0, %v349
    %v351 = vpop.f32.mrb[0].mxu0
    %v352 = vadd.f32 0.0, %v351
    %v353 = vpop.f32.mrb[0].mxu0
    %v354 = vadd.f32 0.0, %v353
    %355 = vmatprep.mubr.bf16.mxu0 0
    %356 = vmatmul.mubr.bf16.gmra.mrb[0].mxu0 %v232
    %v357 = vpop.f32.mrb[0].mxu0
    %v358 = vadd.f32 0.0, %v357
    %v359 = vpop.f32.mrb[0].mxu0
    %v360 = vadd.f32 0.0, %v359
    %v361 = vpop.f32.mrb[0].mxu0
    %v362 = vadd.f32 0.0, %v361
    %v363 = vpop.f32.mrb[0].mxu0
    %v364 = vadd.f32 0.0, %v363
    %365 = vdwg.mxu0
    %v366 = vld [vmem:[%s5] sm:$0x1]
    %v367 = vunpack.c.l.bf16 %v366
    %v368 = vlaneseq
    %v369 = vshrl.u32 %v368, 7
    %v370 = vsub.s32 0, %v369
    %v371 = vrot.slane %v367, %v370
    %v372 = vmul.f32 %v348, %v371
    %s373 = scalar_lea.vmem %s5, 2
    %v374 = vld [vmem:[%s373] sm:$0x1]
    %v375 = vunpack.c.l.bf16 %v374
    %v376 = vlaneseq
    %v377 = vshrl.u32 %v376, 7
    %v378 = vsub.s32 0, %v377
    %v379 = vrot.slane %v375, %v378
    %v380 = vmul.f32 %v352, %v379
    %s381 = scalar_lea.vmem %s5, 4
    %v382 = vld [vmem:[%s381] sm:$0x1]
    %v383 = vunpack.c.l.bf16 %v382
    %v384 = vlaneseq
    %v385 = vshrl.u32 %v384, 7
    %v386 = vsub.s32 0, %v385
    %v387 = vrot.slane %v383, %v386
    %v388 = vmul.f32 %v358, %v387
    %v389 = vadd.f32 %v372, %v388
    %s390 = scalar_lea.vmem %s5, 6
    %v391 = vld [vmem:[%s390] sm:$0x1]
    %v392 = vunpack.c.l.bf16 %v391
    %v393 = vlaneseq
    %v394 = vshrl.u32 %v393, 7
    %v395 = vsub.s32 0, %v394
    %v396 = vrot.slane %v392, %v395
    %v397 = vmul.f32 %v362, %v396
    %v398 = vadd.f32 %v380, %v397
    %v399 = vadd.f32 %v389, %v398
    %v400 = vlaneseq
    %v401 = vshrl.u32 %v400, 7
    %v402 = vsub.s32 1, %v401
    %v403 = vrot.slane %v367, %v402
    %v404 = vmul.f32 %v348, %v403
    %v405 = vlaneseq
    %v406 = vshrl.u32 %v405, 7
    %v407 = vsub.s32 1, %v406
    %v408 = vrot.slane %v375, %v407
    %v409 = vmul.f32 %v352, %v408
    %v410 = vlaneseq
    %v411 = vshrl.u32 %v410, 7
    %v412 = vsub.s32 1, %v411
    %v413 = vrot.slane %v383, %v412
    %v414 = vmul.f32 %v358, %v413
    %v415 = vadd.f32 %v404, %v414
    %v416 = vlaneseq
    %v417 = vshrl.u32 %v416, 7
    %v418 = vsub.s32 1, %v417
    %v419 = vrot.slane %v392, %v418
    %v420 = vmul.f32 %v362, %v419
    %v421 = vadd.f32 %v409, %v420
    %v422 = vadd.f32 %v415, %v421
    %v423 = vld [vmem:[%s5] sm:$0x2]
    %v424 = vunpack.c.l.bf16 %v423
    %v425 = vlaneseq
    %v426 = vshrl.u32 %v425, 7
    %v427 = vsub.s32 2, %v426
    %v428 = vrot.slane %v424, %v427
    %v429 = vmul.f32 %v348, %v428
    %v430 = vld [vmem:[%s373] sm:$0x2]
    %v431 = vunpack.c.l.bf16 %v430
    %v432 = vlaneseq
    %v433 = vshrl.u32 %v432, 7
    %v434 = vsub.s32 2, %v433
    %v435 = vrot.slane %v431, %v434
    %v436 = vmul.f32 %v352, %v435
    %v437 = vld [vmem:[%s381] sm:$0x2]
    %v438 = vunpack.c.l.bf16 %v437
    %v439 = vlaneseq
    %v440 = vshrl.u32 %v439, 7
    %v441 = vsub.s32 2, %v440
    %v442 = vrot.slane %v438, %v441
    %v443 = vmul.f32 %v358, %v442
    %v444 = vadd.f32 %v429, %v443
    %v445 = vld [vmem:[%s390] sm:$0x2]
    %v446 = vunpack.c.l.bf16 %v445
    %v447 = vlaneseq
    %v448 = vshrl.u32 %v447, 7
    %v449 = vsub.s32 2, %v448
    %v450 = vrot.slane %v446, %v449
    %v451 = vmul.f32 %v362, %v450
    %v452 = vadd.f32 %v436, %v451
    %v453 = vadd.f32 %v444, %v452
    %v454 = vlaneseq
    %v455 = vshrl.u32 %v454, 7
    %v456 = vsub.s32 3, %v455
    %v457 = vrot.slane %v424, %v456
    %v458 = vmul.f32 %v348, %v457
    %v459 = vlaneseq
    %v460 = vshrl.u32 %v459, 7
    %v461 = vsub.s32 3, %v460
    %v462 = vrot.slane %v431, %v461
    %v463 = vmul.f32 %v352, %v462
    %v464 = vlaneseq
    %v465 = vshrl.u32 %v464, 7
    %v466 = vsub.s32 3, %v465
    %v467 = vrot.slane %v438, %v466
    %v468 = vmul.f32 %v358, %v467
    %v469 = vadd.f32 %v458, %v468
    %v470 = vlaneseq
    %v471 = vshrl.u32 %v470, 7
    %v472 = vsub.s32 3, %v471
    %v473 = vrot.slane %v446, %v472
    %v474 = vmul.f32 %v362, %v473
    %v475 = vadd.f32 %v463, %v474
    %v476 = vadd.f32 %v469, %v475
    %v477 = vmul.f32 %v350, %v371
    %v478 = vmul.f32 %v354, %v379
    %v479 = vmul.f32 %v360, %v387
    %v480 = vadd.f32 %v477, %v479
    %v481 = vmul.f32 %v364, %v396
    %v482 = vadd.f32 %v478, %v481
    %v483 = vadd.f32 %v480, %v482
    %v484 = vmul.f32 %v350, %v403
    %v485 = vmul.f32 %v354, %v408
    %v486 = vmul.f32 %v360, %v413
    %v487 = vadd.f32 %v484, %v486
    %v488 = vmul.f32 %v364, %v419
    %v489 = vadd.f32 %v485, %v488
    %v490 = vadd.f32 %v487, %v489
    %v491 = vmul.f32 %v350, %v428
    %v492 = vmul.f32 %v354, %v435
    %v493 = vmul.f32 %v360, %v442
    %v494 = vadd.f32 %v491, %v493
    %v495 = vmul.f32 %v364, %v450
    %v496 = vadd.f32 %v492, %v495
    %v497 = vadd.f32 %v494, %v496
    %v498 = vmul.f32 %v350, %v457
    %v499 = vmul.f32 %v354, %v462
    %v500 = vmul.f32 %v360, %v467
    %v501 = vadd.f32 %v498, %v500
    %v502 = vmul.f32 %v364, %v473
    %v503 = vadd.f32 %v499, %v502
    %v504 = vadd.f32 %v501, %v503
    %v505 = vld [vmem:[#allocation8] sm:$0xf]
    %v506 = vld [vmem:[#allocation8 + $0x4] sm:$0xf]
    %v507 = vld [vmem:[#allocation8 + $0x8] sm:$0xf]
    %v508 = vld [vmem:[#allocation8 + $0xc] sm:$0xf]
    %v509 = vld [vmem:[#allocation8 + $0x10] sm:$0xf]
    %v510 = vld [vmem:[#allocation8 + $0x14] sm:$0xf]
    %v511 = vld [vmem:[#allocation8 + $0x18] sm:$0xf]
    %v512 = vld [vmem:[#allocation8 + $0x1c] sm:$0xf]
    %v513 = vld [vmem:[#allocation8 + $0x20] sm:$0xf]
    %v514 = vld [vmem:[#allocation8 + $0x24] sm:$0xf]
    %v515 = vld [vmem:[#allocation8 + $0x28] sm:$0xf]
    %v516 = vld [vmem:[#allocation8 + $0x2c] sm:$0xf]
    %v517 = vld [vmem:[#allocation8 + $0x30] sm:$0xf]
    %v518 = vld [vmem:[#allocation8 + $0x34] sm:$0xf]
    %v519 = vld [vmem:[#allocation8 + $0x38] sm:$0xf]
    %v520 = vld [vmem:[#allocation8 + $0x3c] sm:$0xf]
    %v521 = vld [vmem:[#allocation8 + $0x40] sm:$0xf]
    %v522 = vld [vmem:[#allocation8 + $0x44] sm:$0xf]
    %v523 = vld [vmem:[#allocation8 + $0x48] sm:$0xf]
    %v524 = vld [vmem:[#allocation8 + $0x4c] sm:$0xf]
    %v525 = vld [vmem:[#allocation8 + $0x50] sm:$0xf]
    %v526 = vld [vmem:[#allocation8 + $0x54] sm:$0xf]
    %v527 = vld [vmem:[#allocation8 + $0x58] sm:$0xf]
    %v528 = vld [vmem:[#allocation8 + $0x5c] sm:$0xf]
    %v529 = vld [vmem:[#allocation8 + $0x60] sm:$0xf]
    %v530 = vld [vmem:[#allocation8 + $0x64] sm:$0xf]
    %v531 = vld [vmem:[#allocation8 + $0x68] sm:$0xf]
    %v532 = vld [vmem:[#allocation8 + $0x6c] sm:$0xf]
    %v533 = vld [vmem:[#allocation8 + $0x70] sm:$0xf]
    %v534 = vld [vmem:[#allocation8 + $0x74] sm:$0xf]
    %v535 = vld [vmem:[#allocation8 + $0x78] sm:$0xf]
    %v536 = vld [vmem:[#allocation8 + $0x7c] sm:$0xf]
    %v537 = vpack.c.bf16 %v422, %v399
    %v538 = vpack.c.bf16 %v476, %v453
    %v539 = vpack.c.bf16 %v490, %v483
    %v540 = vpack.c.bf16 %v504, %v497
    %v573 = vunpack.c.l.b16 %v505
    %v574 = vunpack.c.l.b16 %v506
    %v575 = vunpack.c.l.b16 %v507
    %v576 = vunpack.c.l.b16 %v508
    %v577 = vunpack.c.l.b16 %v509
    %v578 = vunpack.c.l.b16 %v510
    %v579 = vunpack.c.l.b16 %v511
    %v580 = vunpack.c.l.b16 %v512
    %v581 = vunpack.c.l.b16 %v513
    %v582 = vunpack.c.l.b16 %v514
    %v583 = vunpack.c.l.b16 %v515
    %v584 = vunpack.c.l.b16 %v516
    %v585 = vunpack.c.l.b16 %v517
    %v586 = vunpack.c.l.b16 %v518
    %v587 = vunpack.c.l.b16 %v519
    %v588 = vunpack.c.l.b16 %v520
    %v589 = vunpack.c.l.b16 %v521
    %v590 = vunpack.c.l.b16 %v522
    %v591 = vunpack.c.l.b16 %v523
    %v592 = vunpack.c.l.b16 %v524
    %v593 = vunpack.c.l.b16 %v525
    %v594 = vunpack.c.l.b16 %v526
    %v595 = vunpack.c.l.b16 %v527
    %v596 = vunpack.c.l.b16 %v528
    %v597 = vunpack.c.l.b16 %v529
    %v598 = vunpack.c.l.b16 %v530
    %v599 = vunpack.c.l.b16 %v531
    %v600 = vunpack.c.l.b16 %v532
    %v601 = vunpack.c.l.b16 %v533
    %v602 = vunpack.c.l.b16 %v534
    %v603 = vunpack.c.l.b16 %v535
    %v604 = vunpack.c.l.b16 %v536
    %v605 = vpack.c.b16 %v574, %v573
    %v606 = vpack.c.b16 %v576, %v575
    %v607 = vpack.c.b16 %v578, %v577
    %v608 = vpack.c.b16 %v580, %v579
    %v609 = vpack.c.b16 %v582, %v581
    %v610 = vpack.c.b16 %v584, %v583
    %v611 = vpack.c.b16 %v586, %v585
    %v612 = vpack.c.b16 %v588, %v587
    %v613 = vpack.c.b16 %v590, %v589
    %v614 = vpack.c.b16 %v592, %v591
    %v615 = vpack.c.b16 %v594, %v593
    %v616 = vpack.c.b16 %v596, %v595
    %v617 = vpack.c.b16 %v598, %v597
    %v618 = vpack.c.b16 %v600, %v599
    %v619 = vpack.c.b16 %v602, %v601
    %v620 = vpack.c.b16 %v604, %v603
    %637 = vmatprep.subr.bf16.mxu0 0
    %638 = vmatpush1.bf16.msra.mxu0 %v605
    %639 = vmatprep.subr.bf16.mxu0 0
    %640 = vmatpush1.bf16.msra.mxu0 %v606
    %641 = vmatprep.subr.bf16.mxu0 0
    %642 = vmatpush1.bf16.msra.mxu0 %v607
    %643 = vmatprep.subr.bf16.mxu0 0
    %644 = vmatpush1.bf16.msra.mxu0 %v608
    %645 = vmatprep.subr.bf16.mxu0 0
    %646 = vmatpush1.bf16.msra.mxu0 %v609
    %647 = vmatprep.subr.bf16.mxu0 0
    %648 = vmatpush1.bf16.msra.mxu0 %v610
    %649 = vmatprep.subr.bf16.mxu0 0
    %650 = vmatpush1.bf16.msra.mxu0 %v611
    %651 = vmatprep.subr.bf16.mxu0 0
    %652 = vmatpush1.bf16.msra.mxu0 %v612
    %653 = vmatprep.subr.bf16.mxu0 0
    %654 = vmatpush1.bf16.msra.mxu0 %v613
    %655 = vmatprep.subr.bf16.mxu0 0
    %656 = vmatpush1.bf16.msra.mxu0 %v614
    %657 = vmatprep.subr.bf16.mxu0 0
    %658 = vmatpush1.bf16.msra.mxu0 %v615
    %659 = vmatprep.subr.bf16.mxu0 0
    %660 = vmatpush1.bf16.msra.mxu0 %v616
    %661 = vmatprep.subr.bf16.mxu0 0
    %662 = vmatpush1.bf16.msra.mxu0 %v617
    %663 = vmatprep.subr.bf16.mxu0 0
    %664 = vmatpush1.bf16.msra.mxu0 %v618
    %665 = vmatprep.subr.bf16.mxu0 0
    %666 = vmatpush1.bf16.msra.mxu0 %v619
    %667 = vmatprep.subr.bf16.mxu0 0
    %668 = vmatpush1.bf16.msra.mxu0 %v620
    %669 = vmatprep.mubr.bf16.mxu0 %v539
    %670 = vmatmul.mubr.bf16.gmra.mrb[0].mxu0 %v537
    %v671 = vpop.f32.mrb[0].mxu0
    %v672 = vadd.f32 0.0, %v671
    %v673 = vpop.f32.mrb[0].mxu0
    %v674 = vpop.f32.mrb[0].mxu0
    %v675 = vadd.f32 0.0, %v674
    %v676 = vpop.f32.mrb[0].mxu0
    %677 = vmatprep.mubr.bf16.mxu0 %v540
    %678 = vmatmul.mubr.bf16.gmra.mrb[0].mxu0 %v538
    %v679 = vpop.f32.mrb[0].mxu0
    %v680 = vadd.f32 0.0, %v679
    %v681 = vpop.f32.mrb[0].mxu0
    %v682 = vpop.f32.mrb[0].mxu0
    %v683 = vadd.f32 0.0, %v682
    %v684 = vpop.f32.mrb[0].mxu0
    %685 = vdwg.mxu0
    %v686 = vld [vmem:[#allocation10] sm:$0xf]
    %v687 = vld [vmem:[#allocation10 + $0x4] sm:$0xf]
    %v688 = vld [vmem:[#allocation10 + $0x8] sm:$0xf]
    %v689 = vld [vmem:[#allocation10 + $0xc] sm:$0xf]
    %v690 = vld [vmem:[#allocation10 + $0x10] sm:$0xf]
    %v691 = vld [vmem:[#allocation10 + $0x14] sm:$0xf]
    %v692 = vld [vmem:[#allocation10 + $0x18] sm:$0xf]
    %v693 = vld [vmem:[#allocation10 + $0x1c] sm:$0xf]
    %v694 = vld [vmem:[#allocation10 + $0x20] sm:$0xf]
    %v695 = vld [vmem:[#allocation10 + $0x24] sm:$0xf]
    %v696 = vld [vmem:[#allocation10 + $0x28] sm:$0xf]
    %v697 = vld [vmem:[#allocation10 + $0x2c] sm:$0xf]
    %v698 = vld [vmem:[#allocation10 + $0x30] sm:$0xf]
    %v699 = vld [vmem:[#allocation10 + $0x34] sm:$0xf]
    %v700 = vld [vmem:[#allocation10 + $0x38] sm:$0xf]
    %v701 = vld [vmem:[#allocation10 + $0x3c] sm:$0xf]
    %v702 = vld [vmem:[#allocation10 + $0x40] sm:$0xf]
    %v703 = vld [vmem:[#allocation10 + $0x44] sm:$0xf]
    %v704 = vld [vmem:[#allocation10 + $0x48] sm:$0xf]
    %v705 = vld [vmem:[#allocation10 + $0x4c] sm:$0xf]
    %v706 = vld [vmem:[#allocation10 + $0x50] sm:$0xf]
    %v707 = vld [vmem:[#allocation10 + $0x54] sm:$0xf]
    %v708 = vld [vmem:[#allocation10 + $0x58] sm:$0xf]
    %v709 = vld [vmem:[#allocation10 + $0x5c] sm:$0xf]
    %v710 = vld [vmem:[#allocation10 + $0x60] sm:$0xf]
    %v711 = vld [vmem:[#allocation10 + $0x64] sm:$0xf]
    %v712 = vld [vmem:[#allocation10 + $0x68] sm:$0xf]
    %v713 = vld [vmem:[#allocation10 + $0x6c] sm:$0xf]
    %v714 = vld [vmem:[#allocation10 + $0x70] sm:$0xf]
    %v715 = vld [vmem:[#allocation10 + $0x74] sm:$0xf]
    %v716 = vld [vmem:[#allocation10 + $0x78] sm:$0xf]
    %v717 = vld [vmem:[#allocation10 + $0x7c] sm:$0xf]
    %v718 = vpack.c.bf16 %v675, %v672
    %v719 = vpack.c.bf16 %v683, %v680
    %v720 = vpack.c.bf16 %v203, %v199
    %v721 = vpack.c.bf16 %v213, %v209
    %v754 = vunpack.c.l.b16 %v686
    %v755 = vunpack.c.l.b16 %v687
    %v756 = vunpack.c.l.b16 %v688
    %v757 = vunpack.c.l.b16 %v689
    %v758 = vunpack.c.l.b16 %v690
    %v759 = vunpack.c.l.b16 %v691
    %v760 = vunpack.c.l.b16 %v692
    %v761 = vunpack.c.l.b16 %v693
    %v762 = vunpack.c.l.b16 %v694
    %v763 = vunpack.c.l.b16 %v695
    %v764 = vunpack.c.l.b16 %v696
    %v765 = vunpack.c.l.b16 %v697
    %v766 = vunpack.c.l.b16 %v698
    %v767 = vunpack.c.l.b16 %v699
    %v768 = vunpack.c.l.b16 %v700
    %v769 = vunpack.c.l.b16 %v701
    %v770 = vunpack.c.l.b16 %v702
    %v771 = vunpack.c.l.b16 %v703
    %v772 = vunpack.c.l.b16 %v704
    %v773 = vunpack.c.l.b16 %v705
    %v774 = vunpack.c.l.b16 %v706
    %v775 = vunpack.c.l.b16 %v707
    %v776 = vunpack.c.l.b16 %v708
    %v777 = vunpack.c.l.b16 %v709
    %v778 = vunpack.c.l.b16 %v710
    %v779 = vunpack.c.l.b16 %v711
    %v780 = vunpack.c.l.b16 %v712
    %v781 = vunpack.c.l.b16 %v713
    %v782 = vunpack.c.l.b16 %v714
    %v783 = vunpack.c.l.b16 %v715
    %v784 = vunpack.c.l.b16 %v716
    %v785 = vunpack.c.l.b16 %v717
    %v786 = vpack.c.b16 %v755, %v754
    %v787 = vpack.c.b16 %v757, %v756
    %v788 = vpack.c.b16 %v759, %v758
    %v789 = vpack.c.b16 %v761, %v760
    %v790 = vpack.c.b16 %v763, %v762
    %v791 = vpack.c.b16 %v765, %v764
    %v792 = vpack.c.b16 %v767, %v766
    %v793 = vpack.c.b16 %v769, %v768
    %v794 = vpack.c.b16 %v771, %v770
    %v795 = vpack.c.b16 %v773, %v772
    %v796 = vpack.c.b16 %v775, %v774
    %v797 = vpack.c.b16 %v777, %v776
    %v798 = vpack.c.b16 %v779, %v778
    %v799 = vpack.c.b16 %v781, %v780
    %v800 = vpack.c.b16 %v783, %v782
    %v801 = vpack.c.b16 %v785, %v784
    %818 = vmatprep.subr.bf16.mxu0 0
    %819 = vmatpush1.bf16.msra.mxu0 %v786
    %820 = vmatprep.subr.bf16.mxu0 0
    %821 = vmatpush1.bf16.msra.mxu0 %v787
    %822 = vmatprep.subr.bf16.mxu0 0
    %823 = vmatpush1.bf16.msra.mxu0 %v788
    %824 = vmatprep.subr.bf16.mxu0 0
    %825 = vmatpush1.bf16.msra.mxu0 %v789
    %826 = vmatprep.subr.bf16.mxu0 0
    %827 = vmatpush1.bf16.msra.mxu0 %v790
    %828 = vmatprep.subr.bf16.mxu0 0
    %829 = vmatpush1.bf16.msra.mxu0 %v791
    %830 = vmatprep.subr.bf16.mxu0 0
    %831 = vmatpush1.bf16.msra.mxu0 %v792
    %832 = vmatprep.subr.bf16.mxu0 0
    %833 = vmatpush1.bf16.msra.mxu0 %v793
    %834 = vmatprep.subr.bf16.mxu0 0
    %835 = vmatpush1.bf16.msra.mxu0 %v794
    %836 = vmatprep.subr.bf16.mxu0 0
    %837 = vmatpush1.bf16.msra.mxu0 %v795
    %838 = vmatprep.subr.bf16.mxu0 0
    %839 = vmatpush1.bf16.msra.mxu0 %v796
    %840 = vmatprep.subr.bf16.mxu0 0
    %841 = vmatpush1.bf16.msra.mxu0 %v797
    %842 = vmatprep.subr.bf16.mxu0 0
    %843 = vmatpush1.bf16.msra.mxu0 %v798
    %844 = vmatprep.subr.bf16.mxu0 0
    %845 = vmatpush1.bf16.msra.mxu0 %v799
    %846 = vmatprep.subr.bf16.mxu0 0
    %847 = vmatpush1.bf16.msra.mxu0 %v800
    %848 = vmatprep.subr.bf16.mxu0 0
    %849 = vmatpush1.bf16.msra.mxu0 %v801
    %850 = vmatprep.mubr.bf16.mxu0 %v720
    %851 = vmatmul.mubr.bf16.gmra.mrb[0].mxu0 %v718
    %v852 = vpop.f32.mrb[0].mxu0
    %v853 = vadd.f32 0.0, %v852
    %v854 = vpop.f32.mrb[0].mxu0
    %v855 = vpop.f32.mrb[0].mxu0
    %v856 = vadd.f32 0.0, %v855
    %v857 = vpop.f32.mrb[0].mxu0
    %858 = vmatprep.mubr.bf16.mxu0 %v721
    %859 = vmatmul.mubr.bf16.gmra.mrb[0].mxu0 %v719
    %v860 = vpop.f32.mrb[0].mxu0
    %v861 = vadd.f32 0.0, %v860
    %v862 = vpop.f32.mrb[0].mxu0
    %v863 = vpop.f32.mrb[0].mxu0
    %v864 = vadd.f32 0.0, %v863
    %v865 = vpop.f32.mrb[0].mxu0
    %866 = vdwg.mxu0
    %867 = vst [vmem:[#allocation11] sm:$0xff] %v853
    %868 = vst [vmem:[#allocation11 + $0x8] sm:$0xff] %v856
    %869 = vst [vmem:[#allocation11 + $0x10] sm:$0xff] %v861
    %870 = vst [vmem:[#allocation11 + $0x18] sm:$0xff] %v864
    // Predicated region
    $region46: #{tpu_custom_call.1} parent=1 // pred_check
      _
    $region47: #{tpu_custom_call.1} parent=1 // pred_check_branch
      %872 = sbr.rel (0) target = $region49
    $region48: #{tpu_custom_call.1} parent=1 // pred_region
      %s874 = ssub.s32 512, 512
      %875 = vsyncadd [#allocation4], %s874
      %s876 = sshll.u32 [#allocation11], 4
      %s877 = int_to_ptr.vmem [resolvable:$true] %s876
      %882 = dma.vmem_to_hbm [thread:$0]  %s877, 512, %s6, [#allocation4], 128, 128, 8
    $region49: #{tpu_custom_call.1} parent=1 // pred_fallthru
      _
    // Predicated region
    $region50: #{tpu_custom_call.1} parent=1 // pred_check
      _
    $region51: #{tpu_custom_call.1} parent=1 // pred_check_branch
      %884 = sbr.rel (0) target = $region53
    $region52: #{tpu_custom_call.1} parent=1 // pred_region
      %885 = dma.done [#allocation4], 512
    $region53: #{tpu_custom_call.1} parent=1 // pred_fallthru
      _
    %886 = vsyncpa [#allocation3], 1
    %887 = vsyncpa [#allocation6], 1
    %888 = vsyncpa [#allocation9], 1
    %889 = vsyncpa [#allocation4], 1

</llo_original>
